<compile_context>
chip_gen: v5e
topology: v5e:2x2
jax: 0.10.0
libtpu: 0.0.40
codegen_flags: <defaults>
</compile_context>

<pallas_src>
import functools

import jax
import jax.numpy as jnp
from jax.experimental import pallas as pl
from jax.experimental.pallas import tpu as pltpu


# bf16 matmul operands (MXU peak); accumulation stays f32 via
# preferred_element_type, all elementwise math stays f32.
_MATMUL_DTYPE = jnp.bfloat16


def _hw_defaults():
    """Generation-dependent VMEM budget and 1x1-conv spatial tile target."""
    try:
        vmem_cap = int(pltpu.get_tpu_info().vmem_capacity_bytes)
    except Exception:
        vmem_cap = 0
    if vmem_cap >= 128 * 1024 * 1024:       # v5e / v6e: 128 MiB physical VMEM
        return 64 * 1024 * 1024, 4096
    return 32 * 1024 * 1024, 2048           # v7x (64 MiB) / unknown: conservative


_VMEM_LIMIT, _CONV_TILE_TARGET = _hw_defaults()


def _mm(a, b):
    return jnp.dot(a.astype(_MATMUL_DTYPE), b.astype(_MATMUL_DTYPE),
                   preferred_element_type=jnp.float32)


def _gelu(x):
    # tanh-form GELU (EUP); ~1e-3 from torch's exact erf default.
    c = 0.7978845608028654  # sqrt(2/pi)
    return 0.5 * x * (1.0 + jnp.tanh(c * (x + 0.044715 * x * x * x)))


def _pick_tile(n, target, align):
    """Largest divisor of n that is <= target and a multiple of align."""
    for t in range(min(n, target), 0, -1):
        if n % t == 0 and t % align == 0:
            return t
    return n


def _pad_last_to(x, mult):
    n = x.shape[-1]
    pad = (-n) % mult
    if pad == 0:
        return x
    cfg = [(0, 0)] * (x.ndim - 1) + [(0, pad)]
    return jnp.pad(x, cfg)


# ----------------------------------------------------------------------------
# Kernel A: 1x1 conv + GELU, channels-first  (conv_init)
# Kernel C: residual add + 1x1 conv + GELU   (conv_fina(FFC(x) + x0))
# ----------------------------------------------------------------------------
def _pw_conv_gelu_kernel(x_ref, w_ref, b_ref, o_ref):
    # x: (Cin, T), w: (Cout, Cin), b: (Cout, 1) -> o: (Cout, T)
    y = _mm(w_ref[...], x_ref[...]) + b_ref[...]
    o_ref[...] = _gelu(y)


def _res_pw_conv_gelu_kernel(a_ref, r_ref, w_ref, b_ref, o_ref):
    s = a_ref[...] + r_ref[...]
    y = _mm(w_ref[...], s) + b_ref[...]
    o_ref[...] = _gelu(y)


def conv1x1_gelu(x_cf, w, b):
    """x_cf: (B, Cin, HW) channels-first; w: (Cout, Cin); b: (Cout, 1)."""
    bsz, cin, hw = x_cf.shape
    cout = w.shape[0]
    xp = _pad_last_to(x_cf, 128)
    hw_p = xp.shape[-1]
    t = _pick_tile(hw_p, _CONV_TILE_TARGET, 128)
    cost = pl.CostEstimate(
        flops=int(2 * bsz * hw_p * cin * cout),
        transcendentals=int(bsz * hw_p * cout),
        bytes_accessed=int(4 * (bsz * hw_p * (cin + cout) + cin * cout + cout)))
    out = pl.pallas_call(
        _pw_conv_gelu_kernel,
        out_shape=jax.ShapeDtypeStruct((bsz, cout, hw_p), jnp.float32),
        grid=(bsz, hw_p // t),
        in_specs=[pl.BlockSpec((None, cin, t), lambda i, j: (i, 0, j)),
                  pl.BlockSpec((cout, cin), lambda i, j: (0, 0)),
                  pl.BlockSpec((cout, 1), lambda i, j: (0, 0))],
        out_specs=pl.BlockSpec((None, cout, t), lambda i, j: (i, 0, j)),
        compiler_params=pltpu.CompilerParams(
            dimension_semantics=("parallel", "parallel"),
            vmem_limit_bytes=_VMEM_LIMIT),
        cost_estimate=cost,
    )(xp, w, b)
    return out[:, :, :hw] if hw_p != hw else out


def res_conv1x1_gelu(a_cf, r_cf, w, b):
    bsz, cin, hw = a_cf.shape
    cout = w.shape[0]
    ap = _pad_last_to(a_cf, 128)
    rp = _pad_last_to(r_cf, 128)
    hw_p = ap.shape[-1]
    t = _pick_tile(hw_p, _CONV_TILE_TARGET, 128)
    cost = pl.CostEstimate(
        flops=int(2 * bsz * hw_p * cin * cout + bsz * hw_p * cin),
        transcendentals=int(bsz * hw_p * cout),
        bytes_accessed=int(4 * (bsz * hw_p * (2 * cin + cout) + cin * cout + cout)))
    out = pl.pallas_call(
        _res_pw_conv_gelu_kernel,
        out_shape=jax.ShapeDtypeStruct((bsz, cout, hw_p), jnp.float32),
        grid=(bsz, hw_p // t),
        in_specs=[pl.BlockSpec((None, cin, t), lambda i, j: (i, 0, j)),
                  pl.BlockSpec((None, cin, t), lambda i, j: (i, 0, j)),
                  pl.BlockSpec((cout, cin), lambda i, j: (0, 0)),
                  pl.BlockSpec((cout, 1), lambda i, j: (0, 0))],
        out_specs=pl.BlockSpec((None, cout, t), lambda i, j: (i, 0, j)),
        compiler_params=pltpu.CompilerParams(
            dimension_semantics=("parallel", "parallel"),
            vmem_limit_bytes=_VMEM_LIMIT),
        cost_estimate=cost,
    )(ap, rp, w, b)
    return out[:, :, :hw] if hw_p != hw else out


# ----------------------------------------------------------------------------
# Kernel B (fused FourierUnit core), channels-first block (cf, HWf):
#   BN(eval) + depthwise 3x3 "fpe" + residual
#   + dynamic-group softmax + grouped 1x1 "fdc" (collapsed to full-K matmul)
#   + group-weighted sum + GELU.
# Shifts for the 3x3 conv are lane-axis rolls with precomputed boundary masks.
# ----------------------------------------------------------------------------
def _fourier_core_kernel(x_ref, mask_ref, bns_ref, bnb_ref, kw_ref, kb_ref,
                         wg_ref, bg_ref, gm_ref, fdcw_ref, fdcb_ref, o_ref, *,
                         wf):
    cf, hw = x_ref.shape

    # BatchNorm2d (eval mode, folded per-channel scale/shift)
    y = x_ref[...] * bns_ref[...] + bnb_ref[...]            # (cf, hw)

    m_hm = mask_ref[0:1, :]   # 0 where image row h == 0
    m_hp = mask_ref[1:2, :]   # 0 where image row h == H-1
    m_wl = mask_ref[2:3, :]   # 0 where image col w == 0
    m_wr = mask_ref[3:4, :]   # 0 where image col w == Wf-1

    # depthwise 3x3: shifted copies via lane rolls (XLU) + zero-pad masks
    y_hm = pltpu.roll(y, wf, axis=1) * m_hm                 # y[h-1, w]
    y_hp = pltpu.roll(y, hw - wf, axis=1) * m_hp            # y[h+1, w]
    k = [kw_ref[:, r:r + 1] for r in range(9)]              # per-channel taps

    # centre kernel column + bias + residual
    y2 = k[1] * y_hm + k[4] * y + k[7] * y_hp + kb_ref[...] + y
    # left / right kernel columns (source column w-1 / w+1)
    s_l = k[0] * y_hm + k[3] * y + k[6] * y_hp
    s_r = k[2] * y_hm + k[5] * y + k[8] * y_hp
    y2 = y2 + pltpu.roll(s_l, 1, axis=1) * m_wl
    y2 = y2 + pltpu.roll(s_r, hw - 1, axis=1) * m_wr

    # dynamic group weights: softmax over G (sublane axis of (G, hw))
    logits = _mm(wg_ref[...], y2) + bg_ref[...]             # (G, hw)
    mx = jnp.max(logits, axis=0, keepdims=True)
    e = jnp.exp(logits - mx)
    dynw = e * pl.reciprocal(jnp.sum(e, axis=0, keepdims=True), approx=True)

    # grouped 1x1 "fdc" + group-weighted sum, collapsed:
    #   sum_g s_g * (W_g @ x_g) == W_full @ (x * col_scale),  col_scale = gmask @ dynw
    col_scale = _mm(gm_ref[...], dynw)                      # (cf, hw)
    out = _mm(fdcw_ref[...], y2 * col_scale) + _mm(fdcb_ref[...], dynw)
    o_ref[...] = _gelu(out)


def fourier_core(ffn, masks, q, wf):
    """ffn: (B, cf, HWf_padded) channels-first, concat Re/Im layout."""
    bsz, cf, hw = ffn.shape
    gsz = q['bg'].shape[0]
    cost = pl.CostEstimate(
        flops=int(bsz * hw * (2 * cf * cf + 6 * cf * gsz + 40 * cf)),
        transcendentals=int(bsz * hw * (gsz + cf + 1)),
        bytes_accessed=int(4 * (2 * bsz * cf * hw + cf * cf + 16 * cf + 4 * hw)))
    # TODO(synk): for very large H*Wf*cf (v7x 64 MiB VMEM) this per-batch block
    # should additionally be tiled over H with a 1-row halo carried in VMEM.
    return pl.pallas_call(
        functools.partial(_fourier_core_kernel, wf=wf),
        out_shape=jax.ShapeDtypeStruct((bsz, cf, hw), jnp.float32),
        grid=(bsz,),
        in_specs=[
            pl.BlockSpec((None, cf, hw), lambda b: (b, 0, 0)),   # ffn
            pl.BlockSpec((4, hw), lambda b: (0, 0)),             # boundary masks
            pl.BlockSpec((cf, 1), lambda b: (0, 0)),             # bn scale
            pl.BlockSpec((cf, 1), lambda b: (0, 0)),             # bn shift
            pl.BlockSpec((cf, 9), lambda b: (0, 0)),             # fpe taps
            pl.BlockSpec((cf, 1), lambda b: (0, 0)),             # fpe bias
            pl.BlockSpec((gsz, cf), lambda b: (0, 0)),           # weight conv W
            pl.BlockSpec((gsz, 1), lambda b: (0, 0)),            # weight conv b
            pl.BlockSpec((cf, gsz), lambda b: (0, 0)),           # group one-hot
            pl.BlockSpec((cf, cf), lambda b: (0, 0)),            # fdc W (full)
            pl.BlockSpec((cf, gsz), lambda b: (0, 0)),           # fdc bias
        ],
        out_specs=pl.BlockSpec((None, cf, hw), lambda b: (b, 0, 0)),
        compiler_params=pltpu.CompilerParams(
            dimension_semantics=("parallel",),
            vmem_limit_bytes=_VMEM_LIMIT),
        cost_estimate=cost,
    )(ffn, masks, q['bn_scale'], q['bn_shift'], q['fpe_w'], q['fpe_b'],
      q['wg'], q['bg'], q['gmask'], q['fdc_w'], q['fdc_b'])


def _make_shift_masks(hh, wf, total):
    """(4, total) f32 masks for the 3x3-conv zero padding, flat (h*Wf+w) order."""
    hw = hh * wf
    idx = jnp.arange(hw, dtype=jnp.int32)
    row = idx // wf
    col = idx % wf
    m = jnp.stack([row >= 1, row <= hh - 2, col >= 1, col <= wf - 2], axis=0)
    m = m.astype(jnp.float32)
    if total > hw:
        m = jnp.pad(m, ((0, 0), (0, total - hw)))
    return m


# ----------------------------------------------------------------------------
# parameters (deterministic synthetic init, shapes follow the torch module,
# stored in the torch "interleaved Re/Im" channel order for the reference)
# ----------------------------------------------------------------------------
def init_params(key, dim, groups=4):
    c2 = 2 * dim
    cf = 4 * dim
    ks = jax.random.split(key, 14)
    s = 0.2
    p = {}
    # conv_init / conv_fina: 1x1 convs stored as (Cout, Cin) + (Cout, 1) bias
    p['w_init'] = s * jax.random.normal(ks[0], (c2, dim), jnp.float32)
    p['b_init'] = s * jax.random.normal(ks[1], (c2, 1), jnp.float32)
    p['w_fina'] = s * jax.random.normal(ks[2], (dim, c2), jnp.float32)
    p['b_fina'] = s * jax.random.normal(ks[3], (dim, 1), jnp.float32)
    # BatchNorm2d(cf) — eval mode, folded
    gamma = 1.0 + 0.1 * jax.random.normal(ks[4], (cf,), jnp.float32)
    beta = 0.1 * jax.random.normal(ks[5], (cf,), jnp.float32)
    rmean = 0.05 * jax.random.normal(ks[6], (cf,), jnp.float32)
    rvar = 1.0 + 0.1 * jax.nn.softplus(jax.random.normal(ks[7], (cf,), jnp.float32))
    scale = gamma / jnp.sqrt(rvar + 1e-5)
    p['bn_scale'] = scale.reshape(1, cf)
    p['bn_shift'] = (beta - rmean * scale).reshape(1, cf)
    # fpe: depthwise 3x3 (row 3*kh+kw holds the per-channel tap)
    p['fpe_w'] = s * jax.random.normal(ks[8], (9, cf), jnp.float32)
    p['fpe_b'] = s * jax.random.normal(ks[9], (1, cf), jnp.float32)
    # weight conv: 1x1, cf -> groups
    p['wg'] = s * jax.random.normal(ks[10], (cf, groups), jnp.float32)
    p['bg'] = s * jax.random.normal(ks[11], (1, groups), jnp.float32)
    # fdc: grouped 1x1; rows g*cg:(g+1)*cg hold group g's (cg, cf) weight
    p['fdc_w'] = s * jax.random.normal(ks[12], (cf, cf), jnp.float32)
    p['fdc_b'] = s * jax.random.normal(ks[13], (groups, cf), jnp.float32)
    return p


def prepare_pallas_params(p, dim, groups=4):
    """Remap the torch-layout (interleaved Re/Im) params to the kernel layout:
    concat Re/Im channel order, channels-first / pre-transposed matrices."""
    c2 = 2 * dim
    cf = 4 * dim
    cg = cf // groups
    j = jnp.arange(cf)
    perm = 2 * (j % c2) + (j // c2)     # new (concat) position -> old (interleaved) channel
    q = {}
    q['w_init'] = p['w_init']
    q['b_init'] = p['b_init']
    q['w_fina'] = p['w_fina']
    q['b_fina'] = p['b_fina']
    q['bn_scale'] = p['bn_scale'][0, perm].reshape(cf, 1)
    q['bn_shift'] = p['bn_shift'][0, perm].reshape(cf, 1)
    q['fpe_w'] = jnp.transpose(p['fpe_w'][:, perm])            # (cf, 9)
    q['fpe_b'] = p['fpe_b'][0, perm].reshape(cf, 1)
    q['wg'] = jnp.transpose(p['wg'][perm, :])                  # (G, cf)
    q['bg'] = p['bg'].reshape(groups, 1)                       # (G, 1)
    grp = perm // cg
    q['gmask'] = (grp[:, None] == jnp.arange(groups)[None, :]).astype(jnp.float32)
    q['fdc_w'] = jnp.transpose(p['fdc_w'][perm, :][:, perm])   # (cf, cf), channels-first
    q['fdc_b'] = jnp.transpose(p['fdc_b'][:, perm])            # (cf, G)
    return q


# ----------------------------------------------------------------------------
# forward (Pallas kernels + jnp.fft glue; everything stays NCHW/channels-first)
# ----------------------------------------------------------------------------
def token_mixer_forward(x, p, groups=4):
    # x: (B, dim, H, W) NCHW, like the torch module
    bsz, dim, hh, ww = x.shape
    c2 = 2 * dim
    cf = 4 * dim
    hw = hh * ww
    q = prepare_pallas_params(p, dim, groups)

    # conv_init (1x1 + GELU), channels-first; output stays NCHW
    x0 = conv1x1_gelu(x.reshape(bsz, dim, hw), q['w_init'], q['b_init'])

    # TODO(synk): rfft2/irfft2 stay in XLA — there is no Pallas FFT primitive.
    fft = jnp.fft.rfft2(x0.reshape(bsz, c2, hh, ww), norm='ortho')   # (B, c2, H, Wf)
    wfq = fft.shape[-1]
    hwf = hh * wfq
    hwf_p = hwf + ((-hwf) % 128)
    # concat Re/Im along channels (contiguous), channels-first, lane-pad spatial
    ffn = jnp.concatenate([jnp.real(fft), jnp.imag(fft)], axis=1)    # (B, cf, H, Wf)
    ffn = ffn.reshape(bsz, cf, hwf).astype(jnp.float32)
    if hwf_p != hwf:
        ffn = jnp.pad(ffn, ((0, 0), (0, 0), (0, hwf_p - hwf)))
    masks = _make_shift_masks(hh, wfq, hwf_p)

    # fused FourierUnit core (BN + fpe + residual + group mixing + GELU)
    fo = fourier_core(ffn, masks, q, wfq)                            # (B, cf, hwf_p)
    fo = fo[:, :, :hwf].reshape(bsz, cf, hh, wfq)

    # back to complex (concat layout: first half = Re, second half = Im), irfft2
    fc = jax.lax.complex(fo[:, :c2], fo[:, c2:])                     # (B, c2, H, Wf)
    y_sp = jnp.fft.irfft2(fc, s=(hh, ww), norm='ortho').astype(jnp.float32)

    # conv_fina( FFC(x) + x0 ), 1x1 + GELU -> NCHW output directly
    out = res_conv1x1_gelu(y_sp.reshape(bsz, c2, hw), x0, q['w_fina'], q['b_fina'])
    return out.reshape(bsz, dim, hh, ww)


# ----------------------------------------------------------------------------
# pure-JAX reference (torch-layout math, no Pallas) for a sanity check
# ----------------------------------------------------------------------------
def reference_forward(x, p, groups=4):
    bsz, dim, hh, ww = x.shape
    c2 = 2 * dim
    cf = 4 * dim
    cg = cf // groups
    xn = jnp.transpose(x, (0, 2, 3, 1))                            # NHWC
    y = _gelu(jnp.einsum('bhwi,oi->bhwo', xn, p['w_init'])
              + p['b_init'].reshape(1, 1, 1, c2))
    x0 = y
    fft = jnp.fft.rfft2(y, axes=(1, 2), norm='ortho')              # (B,H,Wf,c2)
    wf = fft.shape[2]
    ffn = jnp.stack([jnp.real(fft), jnp.imag(fft)], axis=-1).reshape(bsz, hh, wf, cf)
    yb = ffn * p['bn_scale'].reshape(1, 1, 1, cf) + p['bn_shift'].reshape(1, 1, 1, cf)
    yp = jnp.pad(yb, ((0, 0), (1, 1), (1, 1), (0, 0)))
    acc = jnp.zeros_like(yb) + p['fpe_b'].reshape(1, 1, 1, cf)
    for kh in range(3):
        for kw in range(3):
            acc = acc + yp[:, kh:kh + hh, kw:kw + wf, :] \
                  * p['fpe_w'][3 * kh + kw].reshape(1, 1, 1, cf)
    y2 = acc + yb
    logits = jnp.einsum('bhwc,cg->bhwg', y2, p['wg']) + p['bg'].reshape(1, 1, 1, groups)
    dyn_w = jax.nn.softmax(logits, axis=-1)
    out = jnp.zeros_like(y2)
    for g in range(groups):
        og = jnp.einsum('bhwj,jk->bhwk', y2[..., g * cg:(g + 1) * cg],
                        p['fdc_w'][g * cg:(g + 1) * cg]) \
             + p['fdc_b'][g].reshape(1, 1, 1, cf)
        out = out + og * dyn_w[..., g:g + 1]
    out = _gelu(out)
    oc = out.reshape(bsz, hh, wf, c2, 2)
    fc = oc[..., 0] + 1j * oc[..., 1]
    y_sp = jnp.fft.irfft2(fc, s=(hh, ww), axes=(1, 2), norm='ortho')
    o = _gelu(jnp.einsum('bhwi,oi->bhwo', y_sp + x0, p['w_fina'])
              + p['b_fina'].reshape(1, 1, 1, dim))
    return jnp.transpose(o, (0, 3, 1, 2))


if __name__ == "__main__":
    dim = 4
    B, H, W = 2, 16, 16
    key = jax.random.PRNGKey(0)
    kx, kp = jax.random.split(key)
    x = jax.random.normal(kx, (B, dim, H, W), jnp.float32)
    params = init_params(kp, dim)

    fwd = jax.jit(token_mixer_forward)
    out = fwd(x, params)
    out = jax.block_until_ready(out)
    assert out.shape == (B, dim, H, W)

    ref = reference_forward(x, params)
    err = float(jnp.max(jnp.abs(out - ref)))
    # bf16 matmul operands (f32 accumulation) vs. an all-f32 reference.
    assert err < 4e-2, f"kernel/reference mismatch: {err}"
    print("KERNEL_OK")
</pallas_src>

<mosaic_0001>
module attributes {stable_mosaic.version = 11 : i64} {
  func.func @_pw_conv_gelu_kernel(%arg0: i32, %arg1: i32, %arg2: memref<1x4x256xf32, #tpu.memory_space<vmem>>, %arg3: memref<8x4xf32, #tpu.memory_space<vmem>>, %arg4: memref<8x1xf32, #tpu.memory_space<vmem>>, %arg5: memref<1x8x256xf32, #tpu.memory_space<vmem>>) attributes {dimension_semantics = [#tpu.dimension_semantics<parallel>, #tpu.dimension_semantics<parallel>], iteration_bounds = array<i64: 2, 1>, scalar_prefetch = 0 : i64, scratch_operands = 0 : i64, tpu.core_type = #tpu.core_type<tc>, window_params = [{transform_indices = @transform_0, window_bounds = array<i64: 1, 4, 256>}, {pipeline_mode = #tpu.pipeline_mode<synchronous>, transform_indices = @transform_1, window_bounds = array<i64: 8, 4>}, {pipeline_mode = #tpu.pipeline_mode<synchronous>, transform_indices = @transform_2, window_bounds = array<i64: 8, 1>}, {transform_indices = @transform_3, window_bounds = array<i64: 1, 8, 256>}]} {
    %c0 = arith.constant 0 : index
    %c0_0 = arith.constant 0 : index
    %0 = vector.load %arg3[%c0, %c0_0] : memref<8x4xf32, #tpu.memory_space<vmem>>, vector<8x4xf32>
    %c0_1 = arith.constant 0 : index
    %c0_2 = arith.constant 0 : index
    %c0_3 = arith.constant 0 : index
    %1 = vector.load %arg2[%c0_1, %c0_2, %c0_3] : memref<1x4x256xf32, #tpu.memory_space<vmem>>, vector<1x4x256xf32>
    %2 = vector.shape_cast %1 : vector<1x4x256xf32> to vector<4x256xf32>
    %3 = arith.truncf %0 : vector<8x4xf32> to vector<8x4xbf16>
    %4 = arith.truncf %2 : vector<4x256xf32> to vector<4x256xbf16>
    %cst = arith.constant dense<0.000000e+00> : vector<8x256xf32>
    %5 = tpu.matmul %3, %4, %cst {dimension_numbers = #tpu.dot_dimension_numbers<[1], [0], [0], [1], [0, 0, 1, 1], [], []>} : vector<8x4xbf16>, vector<4x256xbf16>, vector<8x256xf32> -> vector<8x256xf32>
    %c0_4 = arith.constant 0 : index
    %c0_5 = arith.constant 0 : index
    %6 = vector.load %arg4[%c0_4, %c0_5] : memref<8x1xf32, #tpu.memory_space<vmem>>, vector<8x1xf32>
    %7 = vector.broadcast %6 : vector<8x1xf32> to vector<8x256xf32>
    %8 = arith.addf %5, %7 : vector<8x256xf32>
    %cst_6 = arith.constant 5.000000e-01 : f32
    %9 = vector.broadcast %cst_6 : f32 to vector<8x256xf32>
    %10 = arith.mulf %9, %8 : vector<8x256xf32>
    %cst_7 = arith.constant 4.471500e-02 : f32
    %11 = vector.broadcast %cst_7 : f32 to vector<8x256xf32>
    %12 = arith.mulf %11, %8 : vector<8x256xf32>
    %13 = arith.mulf %12, %8 : vector<8x256xf32>
    %14 = arith.mulf %13, %8 : vector<8x256xf32>
    %15 = arith.addf %8, %14 : vector<8x256xf32>
    %cst_8 = arith.constant 0.797884583 : f32
    %16 = vector.broadcast %cst_8 : f32 to vector<8x256xf32>
    %17 = arith.mulf %16, %15 : vector<8x256xf32>
    %18 = math.tanh %17 : vector<8x256xf32>
    %cst_9 = arith.constant 1.000000e+00 : f32
    %19 = vector.broadcast %cst_9 : f32 to vector<8x256xf32>
    %20 = arith.addf %19, %18 : vector<8x256xf32>
    %21 = arith.mulf %10, %20 : vector<8x256xf32>
    %c0_10 = arith.constant 0 : index
    %c0_11 = arith.constant 0 : index
    %c0_12 = arith.constant 0 : index
    %22 = vector.load %arg5[%c0_10, %c0_11, %c0_12] : memref<1x8x256xf32, #tpu.memory_space<vmem>>, vector<1x8x256xf32>
    %23 = vector.shape_cast %22 : vector<1x8x256xf32> to vector<8x256xf32>
    %24 = vector.shape_cast %21 : vector<8x256xf32> to vector<1x8x256xf32>
    tpu.vector_store %arg5[%c0_10, %c0_11, %c0_12], %24 {strides = array<i32>} : memref<1x8x256xf32, #tpu.memory_space<vmem>>, vector<1x8x256xf32>,
    return
  }
  func.func @transform_0(%arg0: i32, %arg1: i32) -> (i32, i32, i32) {
    %c0_i32 = arith.constant 0 : i32
    %c0_i32_0 = arith.constant 0 : i32
    return %arg0, %c0_i32, %arg1 : i32, i32, i32
  }
  func.func @transform_1(%arg0: i32, %arg1: i32) -> (i32, i32) {
    %c0_i32 = arith.constant 0 : i32
    %c0_i32_0 = arith.constant 0 : i32
    %c0_i32_1 = arith.constant 0 : i32
    return %c0_i32, %c0_i32_0 : i32, i32
  }
  func.func @transform_2(%arg0: i32, %arg1: i32) -> (i32, i32) {
    %c0_i32 = arith.constant 0 : i32
    %c0_i32_0 = arith.constant 0 : i32
    %c0_i32_1 = arith.constant 0 : i32
    return %c0_i32, %c0_i32_0 : i32, i32
  }
  func.func @transform_3(%arg0: i32, %arg1: i32) -> (i32, i32, i32) {
    %c0_i32 = arith.constant 0 : i32
    %c0_i32_0 = arith.constant 0 : i32
    return %arg0, %c0_i32, %arg1 : i32, i32, i32
  }
}

module attributes {stable_mosaic.version = 11 : i64} {
  func.func @_fourier_core_kernel(%arg0: i32, %arg1: memref<1x16x256xf32, #tpu.memory_space<vmem>>, %arg2: memref<4x256xf32, #tpu.memory_space<vmem>>, %arg3: memref<16x1xf32, #tpu.memory_space<vmem>>, %arg4: memref<16x1xf32, #tpu.memory_space<vmem>>, %arg5: memref<16x9xf32, #tpu.memory_space<vmem>>, %arg6: memref<16x1xf32, #tpu.memory_space<vmem>>, %arg7: memref<4x16xf32, #tpu.memory_space<vmem>>, %arg8: memref<4x1xf32, #tpu.memory_space<vmem>>, %arg9: memref<16x4xf32, #tpu.memory_space<vmem>>, %arg10: memref<16x16xf32, #tpu.memory_space<vmem>>, %arg11: memref<16x4xf32, #tpu.memory_space<vmem>>, %arg12: memref<1x16x256xf32, #tpu.memory_space<vmem>>) attributes {dimension_semantics = [#tpu.dimension_semantics<parallel>], iteration_bounds = array<i64: 2>, scalar_prefetch = 0 : i64, scratch_operands = 0 : i64, tpu.core_type = #tpu.core_type<tc>, window_params = [{transform_indices = @transform_0, window_bounds = array<i64: 1, 16, 256>}, {pipeline_mode = #tpu.pipeline_mode<synchronous>, transform_indices = @transform_1, window_bounds = array<i64: 4, 256>}, {pipeline_mode = #tpu.pipeline_mode<synchronous>, transform_indices = @transform_2, window_bounds = array<i64: 16, 1>}, {pipeline_mode = #tpu.pipeline_mode<synchronous>, transform_indices = @transform_3, window_bounds = array<i64: 16, 1>}, {pipeline_mode = #tpu.pipeline_mode<synchronous>, transform_indices = @transform_4, window_bounds = array<i64: 16, 9>}, {pipeline_mode = #tpu.pipeline_mode<synchronous>, transform_indices = @transform_5, window_bounds = array<i64: 16, 1>}, {pipeline_mode = #tpu.pipeline_mode<synchronous>, transform_indices = @transform_6, window_bounds = array<i64: 4, 16>}, {pipeline_mode = #tpu.pipeline_mode<synchronous>, transform_indices = @transform_7, window_bounds = array<i64: 4, 1>}, {pipeline_mode = #tpu.pipeline_mode<synchronous>, transform_indices = @transform_8, window_bounds = array<i64: 16, 4>}, {pipeline_mode = #tpu.pipeline_mode<synchronous>, transform_indices = @transform_9, window_bounds = array<i64: 16, 16>}, {pipeline_mode = #tpu.pipeline_mode<synchronous>, transform_indices = @transform_10, window_bounds = array<i64: 16, 4>}, {transform_indices = @transform_11, window_bounds = array<i64: 1, 16, 256>}]} {
    %c0 = arith.constant 0 : index
    %c0_0 = arith.constant 0 : index
    %c0_1 = arith.constant 0 : index
    %0 = vector.load %arg1[%c0, %c0_0, %c0_1] : memref<1x16x256xf32, #tpu.memory_space<vmem>>, vector<1x16x256xf32>
    %1 = vector.shape_cast %0 : vector<1x16x256xf32> to vector<16x256xf32>
    %c0_2 = arith.constant 0 : index
    %c0_3 = arith.constant 0 : index
    %2 = vector.load %arg3[%c0_2, %c0_3] : memref<16x1xf32, #tpu.memory_space<vmem>>, vector<16x1xf32>
    %3 = vector.broadcast %2 : vector<16x1xf32> to vector<16x256xf32>
    %4 = arith.mulf %1, %3 : vector<16x256xf32>
    %c0_4 = arith.constant 0 : index
    %c0_5 = arith.constant 0 : index
    %5 = vector.load %arg4[%c0_4, %c0_5] : memref<16x1xf32, #tpu.memory_space<vmem>>, vector<16x1xf32>
    %6 = vector.broadcast %5 : vector<16x1xf32> to vector<16x256xf32>
    %7 = arith.addf %4, %6 : vector<16x256xf32>
    %c0_6 = arith.constant 0 : index
    %c0_7 = arith.constant 0 : index
    %8 = vector.load %arg2[%c0_6, %c0_7] : memref<4x256xf32, #tpu.memory_space<vmem>>, vector<1x256xf32>
    %c1 = arith.constant 1 : index
    %c0_8 = arith.constant 0 : index
    %9 = vector.load %arg2[%c1, %c0_8] : memref<4x256xf32, #tpu.memory_space<vmem>>, vector<1x256xf32>
    %c2 = arith.constant 2 : index
    %c0_9 = arith.constant 0 : index
    %10 = vector.load %arg2[%c2, %c0_9] : memref<4x256xf32, #tpu.memory_space<vmem>>, vector<1x256xf32>
    %c3 = arith.constant 3 : index
    %c0_10 = arith.constant 0 : index
    %11 = vector.load %arg2[%c3, %c0_10] : memref<4x256xf32, #tpu.memory_space<vmem>>, vector<1x256xf32>
    %c9_i32 = arith.constant 9 : i32
    %12 = tpu.dynamic_rotate %7 by %c9_i32 dim 1 : vector<16x256xf32>, i32 -> vector<16x256xf32>
    %13 = vector.broadcast %8 : vector<1x256xf32> to vector<16x256xf32>
    %14 = arith.mulf %12, %13 : vector<16x256xf32>
    %c247_i32 = arith.constant 247 : i32
    %15 = tpu.dynamic_rotate %7 by %c247_i32 dim 1 : vector<16x256xf32>, i32 -> vector<16x256xf32>
    %16 = vector.broadcast %9 : vector<1x256xf32> to vector<16x256xf32>
    %17 = arith.mulf %15, %16 : vector<16x256xf32>
    %c0_11 = arith.constant 0 : index
    %c0_12 = arith.constant 0 : index
    %18 = vector.load %arg5[%c0_11, %c0_12] : memref<16x9xf32, #tpu.memory_space<vmem>>, vector<16x1xf32>
    %c0_13 = arith.constant 0 : index
    %c1_14 = arith.constant 1 : index
    %19 = vector.load %arg5[%c0_13, %c1_14] : memref<16x9xf32, #tpu.memory_space<vmem>>, vector<16x1xf32>
    %c0_15 = arith.constant 0 : index
    %c2_16 = arith.constant 2 : index
    %20 = vector.load %arg5[%c0_15, %c2_16] : memref<16x9xf32, #tpu.memory_space<vmem>>, vector<16x1xf32>
    %c0_17 = arith.constant 0 : index
    %c3_18 = arith.constant 3 : index
    %21 = vector.load %arg5[%c0_17, %c3_18] : memref<16x9xf32, #tpu.memory_space<vmem>>, vector<16x1xf32>
    %c0_19 = arith.constant 0 : index
    %c4 = arith.constant 4 : index
    %22 = vector.load %arg5[%c0_19, %c4] : memref<16x9xf32, #tpu.memory_space<vmem>>, vector<16x1xf32>
    %c0_20 = arith.constant 0 : index
    %c5 = arith.constant 5 : index
    %23 = vector.load %arg5[%c0_20, %c5] : memref<16x9xf32, #tpu.memory_space<vmem>>, vector<16x1xf32>
    %c0_21 = arith.constant 0 : index
    %c6 = arith.constant 6 : index
    %24 = vector.load %arg5[%c0_21, %c6] : memref<16x9xf32, #tpu.memory_space<vmem>>, vector<16x1xf32>
    %c0_22 = arith.constant 0 : index
    %c7 = arith.constant 7 : index
    %25 = vector.load %arg5[%c0_22, %c7] : memref<16x9xf32, #tpu.memory_space<vmem>>, vector<16x1xf32>
    %c0_23 = arith.constant 0 : index
    %c8 = arith.constant 8 : index
    %26 = vector.load %arg5[%c0_23, %c8] : memref<16x9xf32, #tpu.memory_space<vmem>>, vector<16x1xf32>
    %27 = vector.broadcast %19 : vector<16x1xf32> to vector<16x256xf32>
    %28 = arith.mulf %27, %14 : vector<16x256xf32>
    %29 = vector.broadcast %22 : vector<16x1xf32> to vector<16x256xf32>
    %30 = arith.mulf %29, %7 : vector<16x256xf32>
    %31 = arith.addf %28, %30 : vector<16x256xf32>
    %32 = vector.broadcast %25 : vector<16x1xf32> to vector<16x256xf32>
    %33 = arith.mulf %32, %17 : vector<16x256xf32>
    %34 = arith.addf %31, %33 : vector<16x256xf32>
    %c0_24 = arith.constant 0 : index
    %c0_25 = arith.constant 0 : index
    %35 = vector.load %arg6[%c0_24, %c0_25] : memref<16x1xf32, #tpu.memory_space<vmem>>, vector<16x1xf32>
    %36 = vector.broadcast %35 : vector<16x1xf32> to vector<16x256xf32>
    %37 = arith.addf %34, %36 : vector<16x256xf32>
    %38 = arith.addf %37, %7 : vector<16x256xf32>
    %39 = vector.broadcast %18 : vector<16x1xf32> to vector<16x256xf32>
    %40 = arith.mulf %39, %14 : vector<16x256xf32>
    %41 = vector.broadcast %21 : vector<16x1xf32> to vector<16x256xf32>
    %42 = arith.mulf %41, %7 : vector<16x256xf32>
    %43 = arith.addf %40, %42 : vector<16x256xf32>
    %44 = vector.broadcast %24 : vector<16x1xf32> to vector<16x256xf32>
    %45 = arith.mulf %44, %17 : vector<16x256xf32>
    %46 = arith.addf %43, %45 : vector<16x256xf32>
    %47 = vector.broadcast %20 : vector<16x1xf32> to vector<16x256xf32>
    %48 = arith.mulf %47, %14 : vector<16x256xf32>
    %49 = vector.broadcast %23 : vector<16x1xf32> to vector<16x256xf32>
    %50 = arith.mulf %49, %7 : vector<16x256xf32>
    %51 = arith.addf %48, %50 : vector<16x256xf32>
    %52 = vector.broadcast %26 : vector<16x1xf32> to vector<16x256xf32>
    %53 = arith.mulf %52, %17 : vector<16x256xf32>
    %54 = arith.addf %51, %53 : vector<16x256xf32>
    %c1_i32 = arith.constant 1 : i32
    %55 = tpu.dynamic_rotate %46 by %c1_i32 dim 1 : vector<16x256xf32>, i32 -> vector<16x256xf32>
    %56 = vector.broadcast %10 : vector<1x256xf32> to vector<16x256xf32>
    %57 = arith.mulf %55, %56 : vector<16x256xf32>
    %58 = arith.addf %38, %57 : vector<16x256xf32>
    %c255_i32 = arith.constant 255 : i32
    %59 = tpu.dynamic_rotate %54 by %c255_i32 dim 1 : vector<16x256xf32>, i32 -> vector<16x256xf32>
    %60 = vector.broadcast %11 : vector<1x256xf32> to vector<16x256xf32>
    %61 = arith.mulf %59, %60 : vector<16x256xf32>
    %62 = arith.addf %58, %61 : vector<16x256xf32>
    %c0_26 = arith.constant 0 : index
    %c0_27 = arith.constant 0 : index
    %63 = vector.load %arg7[%c0_26, %c0_27] : memref<4x16xf32, #tpu.memory_space<vmem>>, vector<4x16xf32>
    %64 = arith.truncf %63 : vector<4x16xf32> to vector<4x16xbf16>
    %65 = arith.truncf %62 : vector<16x256xf32> to vector<16x256xbf16>
    %cst = arith.constant dense<0.000000e+00> : vector<4x256xf32>
    %66 = tpu.matmul %64, %65, %cst {dimension_numbers = #tpu.dot_dimension_numbers<[1], [0], [0], [1], [0, 0, 1, 1], [], []>} : vector<4x16xbf16>, vector<16x256xbf16>, vector<4x256xf32> -> vector<4x256xf32>
    %c0_28 = arith.constant 0 : index
    %c0_29 = arith.constant 0 : index
    %67 = vector.load %arg8[%c0_28, %c0_29] : memref<4x1xf32, #tpu.memory_space<vmem>>, vector<4x1xf32>
    %68 = vector.broadcast %67 : vector<4x1xf32> to vector<4x256xf32>
    %69 = arith.addf %66, %68 : vector<4x256xf32>
    %cst_30 = arith.constant dense<0xFF800000> : vector<256xf32>
    %70 = vector.multi_reduction <maximumf>, %69, %cst_30 [0] : vector<4x256xf32> to vector<256xf32>
    %71 = vector.shape_cast %70 : vector<256xf32> to vector<1x256xf32>
    %72 = vector.broadcast %71 : vector<1x256xf32> to vector<4x256xf32>
    %73 = arith.subf %69, %72 : vector<4x256xf32>
    %74 = math.exp %73 : vector<4x256xf32>
    %cst_31 = arith.constant dense<0.000000e+00> : vector<256xf32>
    %75 = vector.multi_reduction <add>, %74, %cst_31 [0] : vector<4x256xf32> to vector<256xf32>
    %76 = vector.shape_cast %75 : vector<256xf32> to vector<1x256xf32>
    %77 = tpu.reciprocal %76 {approx = true} : vector<1x256xf32> -> vector<1x256xf32>
    %78 = vector.broadcast %77 : vector<1x256xf32> to vector<4x256xf32>
    %79 = arith.mulf %74, %78 : vector<4x256xf32>
    %c0_32 = arith.constant 0 : index
    %c0_33 = arith.constant 0 : index
    %80 = vector.load %arg9[%c0_32, %c0_33] : memref<16x4xf32, #tpu.memory_space<vmem>>, vector<16x4xf32>
    %81 = arith.truncf %80 : vector<16x4xf32> to vector<16x4xbf16>
    %82 = arith.truncf %79 : vector<4x256xf32> to vector<4x256xbf16>
    %cst_34 = arith.constant dense<0.000000e+00> : vector<16x256xf32>
    %83 = tpu.matmul %81, %82, %cst_34 {dimension_numbers = #tpu.dot_dimension_numbers<[1], [0], [0], [1], [0, 0, 1, 1], [], []>} : vector<16x4xbf16>, vector<4x256xbf16>, vector<16x256xf32> -> vector<16x256xf32>
    %c0_35 = arith.constant 0 : index
    %c0_36 = arith.constant 0 : index
    %84 = vector.load %arg10[%c0_35, %c0_36] : memref<16x16xf32, #tpu.memory_space<vmem>>, vector<16x16xf32>
    %85 = arith.mulf %62, %83 : vector<16x256xf32>
    %86 = arith.truncf %84 : vector<16x16xf32> to vector<16x16xbf16>
    %87 = arith.truncf %85 : vector<16x256xf32> to vector<16x256xbf16>
    %cst_37 = arith.constant dense<0.000000e+00> : vector<16x256xf32>
    %88 = tpu.matmul %86, %87, %cst_37 {dimension_numbers = #tpu.dot_dimension_numbers<[1], [0], [0], [1], [0, 0, 1, 1], [], []>} : vector<16x16xbf16>, vector<16x256xbf16>, vector<16x256xf32> -> vector<16x256xf32>
    %c0_38 = arith.constant 0 : index
    %c0_39 = arith.constant 0 : index
    %89 = vector.load %arg11[%c0_38, %c0_39] : memref<16x4xf32, #tpu.memory_space<vmem>>, vector<16x4xf32>
    %90 = arith.truncf %89 : vector<16x4xf32> to vector<16x4xbf16>
    %91 = arith.truncf %79 : vector<4x256xf32> to vector<4x256xbf16>
    %cst_40 = arith.constant dense<0.000000e+00> : vector<16x256xf32>
    %92 = tpu.matmul %90, %91, %cst_40 {dimension_numbers = #tpu.dot_dimension_numbers<[1], [0], [0], [1], [0, 0, 1, 1], [], []>} : vector<16x4xbf16>, vector<4x256xbf16>, vector<16x256xf32> -> vector<16x256xf32>
    %93 = arith.addf %88, %92 : vector<16x256xf32>
    %cst_41 = arith.constant 5.000000e-01 : f32
    %94 = vector.broadcast %cst_41 : f32 to vector<16x256xf32>
    %95 = arith.mulf %94, %93 : vector<16x256xf32>
    %cst_42 = arith.constant 4.471500e-02 : f32
    %96 = vector.broadcast %cst_42 : f32 to vector<16x256xf32>
    %97 = arith.mulf %96, %93 : vector<16x256xf32>
    %98 = arith.mulf %97, %93 : vector<16x256xf32>
    %99 = arith.mulf %98, %93 : vector<16x256xf32>
    %100 = arith.addf %93, %99 : vector<16x256xf32>
    %cst_43 = arith.constant 0.797884583 : f32
    %101 = vector.broadcast %cst_43 : f32 to vector<16x256xf32>
    %102 = arith.mulf %101, %100 : vector<16x256xf32>
    %103 = math.tanh %102 : vector<16x256xf32>
    %cst_44 = arith.constant 1.000000e+00 : f32
    %104 = vector.broadcast %cst_44 : f32 to vector<16x256xf32>
    %105 = arith.addf %104, %103 : vector<16x256xf32>
    %106 = arith.mulf %95, %105 : vector<16x256xf32>
    %c0_45 = arith.constant 0 : index
    %c0_46 = arith.constant 0 : index
    %c0_47 = arith.constant 0 : index
    %107 = vector.load %arg12[%c0_45, %c0_46, %c0_47] : memref<1x16x256xf32, #tpu.memory_space<vmem>>, vector<1x16x256xf32>
    %108 = vector.shape_cast %107 : vector<1x16x256xf32> to vector<16x256xf32>
    %109 = vector.shape_cast %106 : vector<16x256xf32> to vector<1x16x256xf32>
    tpu.vector_store %arg12[%c0_45, %c0_46, %c0_47], %109 {strides = array<i32>} : memref<1x16x256xf32, #tpu.memory_space<vmem>>, vector<1x16x256xf32>,
    return
  }
  func.func @transform_0(%arg0: i32) -> (i32, i32, i32) {
    %c0_i32 = arith.constant 0 : i32
    %c0_i32_0 = arith.constant 0 : i32
    %c0_i32_1 = arith.constant 0 : i32
    return %arg0, %c0_i32, %c0_i32_0 : i32, i32, i32
  }
  func.func @transform_1(%arg0: i32) -> (i32, i32) {
    %c0_i32 = arith.constant 0 : i32
    %c0_i32_0 = arith.constant 0 : i32
    %c0_i32_1 = arith.constant 0 : i32
    return %c0_i32, %c0_i32_0 : i32, i32
  }
  func.func @transform_2(%arg0: i32) -> (i32, i32) {
    %c0_i32 = arith.constant 0 : i32
    %c0_i32_0 = arith.constant 0 : i32
    %c0_i32_1 = arith.constant 0 : i32
    return %c0_i32, %c0_i32_0 : i32, i32
  }
  func.func @transform_3(%arg0: i32) -> (i32, i32) {
    %c0_i32 = arith.constant 0 : i32
    %c0_i32_0 = arith.constant 0 : i32
    %c0_i32_1 = arith.constant 0 : i32
    return %c0_i32, %c0_i32_0 : i32, i32
  }
  func.func @transform_4(%arg0: i32) -> (i32, i32) {
    %c0_i32 = arith.constant 0 : i32
    %c0_i32_0 = arith.constant 0 : i32
    %c0_i32_1 = arith.constant 0 : i32
    return %c0_i32, %c0_i32_0 : i32, i32
  }
  func.func @transform_5(%arg0: i32) -> (i32, i32) {
    %c0_i32 = arith.constant 0 : i32
    %c0_i32_0 = arith.constant 0 : i32
    %c0_i32_1 = arith.constant 0 : i32
    return %c0_i32, %c0_i32_0 : i32, i32
  }
  func.func @transform_6(%arg0: i32) -> (i32, i32) {
    %c0_i32 = arith.constant 0 : i32
    %c0_i32_0 = arith.constant 0 : i32
    %c0_i32_1 = arith.constant 0 : i32
    return %c0_i32, %c0_i32_0 : i32, i32
  }
  func.func @transform_7(%arg0: i32) -> (i32, i32) {
    %c0_i32 = arith.constant 0 : i32
    %c0_i32_0 = arith.constant 0 : i32
    %c0_i32_1 = arith.constant 0 : i32
    return %c0_i32, %c0_i32_0 : i32, i32
  }
  func.func @transform_8(%arg0: i32) -> (i32, i32) {
    %c0_i32 = arith.constant 0 : i32
    %c0_i32_0 = arith.constant 0 : i32
    %c0_i32_1 = arith.constant 0 : i32
    return %c0_i32, %c0_i32_0 : i32, i32
  }
  func.func @transform_9(%arg0: i32) -> (i32, i32) {
    %c0_i32 = arith.constant 0 : i32
    %c0_i32_0 = arith.constant 0 : i32
    %c0_i32_1 = arith.constant 0 : i32
    return %c0_i32, %c0_i32_0 : i32, i32
  }
  func.func @transform_10(%arg0: i32) -> (i32, i32) {
    %c0_i32 = arith.constant 0 : i32
    %c0_i32_0 = arith.constant 0 : i32
    %c0_i32_1 = arith.constant 0 : i32
    return %c0_i32, %c0_i32_0 : i32, i32
  }
  func.func @transform_11(%arg0: i32) -> (i32, i32, i32) {
    %c0_i32 = arith.constant 0 : i32
    %c0_i32_0 = arith.constant 0 : i32
    %c0_i32_1 = arith.constant 0 : i32
    return %arg0, %c0_i32, %c0_i32_0 : i32, i32, i32
  }
}

module attributes {stable_mosaic.version = 11 : i64} {
  func.func @_res_pw_conv_gelu_kernel(%arg0: i32, %arg1: i32, %arg2: memref<1x8x256xf32, #tpu.memory_space<vmem>>, %arg3: memref<1x8x256xf32, #tpu.memory_space<vmem>>, %arg4: memref<4x8xf32, #tpu.memory_space<vmem>>, %arg5: memref<4x1xf32, #tpu.memory_space<vmem>>, %arg6: memref<1x4x256xf32, #tpu.memory_space<vmem>>) attributes {dimension_semantics = [#tpu.dimension_semantics<parallel>, #tpu.dimension_semantics<parallel>], iteration_bounds = array<i64: 2, 1>, scalar_prefetch = 0 : i64, scratch_operands = 0 : i64, tpu.core_type = #tpu.core_type<tc>, window_params = [{transform_indices = @transform_0, window_bounds = array<i64: 1, 8, 256>}, {transform_indices = @transform_1, window_bounds = array<i64: 1, 8, 256>}, {pipeline_mode = #tpu.pipeline_mode<synchronous>, transform_indices = @transform_2, window_bounds = array<i64: 4, 8>}, {pipeline_mode = #tpu.pipeline_mode<synchronous>, transform_indices = @transform_3, window_bounds = array<i64: 4, 1>}, {transform_indices = @transform_4, window_bounds = array<i64: 1, 4, 256>}]} {
    %c0 = arith.constant 0 : index
    %c0_0 = arith.constant 0 : index
    %c0_1 = arith.constant 0 : index
    %0 = vector.load %arg2[%c0, %c0_0, %c0_1] : memref<1x8x256xf32, #tpu.memory_space<vmem>>, vector<1x8x256xf32>
    %1 = vector.shape_cast %0 : vector<1x8x256xf32> to vector<8x256xf32>
    %c0_2 = arith.constant 0 : index
    %c0_3 = arith.constant 0 : index
    %c0_4 = arith.constant 0 : index
    %2 = vector.load %arg3[%c0_2, %c0_3, %c0_4] : memref<1x8x256xf32, #tpu.memory_space<vmem>>, vector<1x8x256xf32>
    %3 = vector.shape_cast %2 : vector<1x8x256xf32> to vector<8x256xf32>
    %4 = arith.addf %1, %3 : vector<8x256xf32>
    %c0_5 = arith.constant 0 : index
    %c0_6 = arith.constant 0 : index
    %5 = vector.load %arg4[%c0_5, %c0_6] : memref<4x8xf32, #tpu.memory_space<vmem>>, vector<4x8xf32>
    %6 = arith.truncf %5 : vector<4x8xf32> to vector<4x8xbf16>
    %7 = arith.truncf %4 : vector<8x256xf32> to vector<8x256xbf16>
    %cst = arith.constant dense<0.000000e+00> : vector<4x256xf32>
    %8 = tpu.matmul %6, %7, %cst {dimension_numbers = #tpu.dot_dimension_numbers<[1], [0], [0], [1], [0, 0, 1, 1], [], []>} : vector<4x8xbf16>, vector<8x256xbf16>, vector<4x256xf32> -> vector<4x256xf32>
    %c0_7 = arith.constant 0 : index
    %c0_8 = arith.constant 0 : index
    %9 = vector.load %arg5[%c0_7, %c0_8] : memref<4x1xf32, #tpu.memory_space<vmem>>, vector<4x1xf32>
    %10 = vector.broadcast %9 : vector<4x1xf32> to vector<4x256xf32>
    %11 = arith.addf %8, %10 : vector<4x256xf32>
    %cst_9 = arith.constant 5.000000e-01 : f32
    %12 = vector.broadcast %cst_9 : f32 to vector<4x256xf32>
    %13 = arith.mulf %12, %11 : vector<4x256xf32>
    %cst_10 = arith.constant 4.471500e-02 : f32
    %14 = vector.broadcast %cst_10 : f32 to vector<4x256xf32>
    %15 = arith.mulf %14, %11 : vector<4x256xf32>
    %16 = arith.mulf %15, %11 : vector<4x256xf32>
    %17 = arith.mulf %16, %11 : vector<4x256xf32>
    %18 = arith.addf %11, %17 : vector<4x256xf32>
    %cst_11 = arith.constant 0.797884583 : f32
    %19 = vector.broadcast %cst_11 : f32 to vector<4x256xf32>
    %20 = arith.mulf %19, %18 : vector<4x256xf32>
    %21 = math.tanh %20 : vector<4x256xf32>
    %cst_12 = arith.constant 1.000000e+00 : f32
    %22 = vector.broadcast %cst_12 : f32 to vector<4x256xf32>
    %23 = arith.addf %22, %21 : vector<4x256xf32>
    %24 = arith.mulf %13, %23 : vector<4x256xf32>
    %c0_13 = arith.constant 0 : index
    %c0_14 = arith.constant 0 : index
    %c0_15 = arith.constant 0 : index
    %25 = vector.load %arg6[%c0_13, %c0_14, %c0_15] : memref<1x4x256xf32, #tpu.memory_space<vmem>>, vector<1x4x256xf32>
    %26 = vector.shape_cast %25 : vector<1x4x256xf32> to vector<4x256xf32>
    %27 = vector.shape_cast %24 : vector<4x256xf32> to vector<1x4x256xf32>
    tpu.vector_store %arg6[%c0_13, %c0_14, %c0_15], %27 {strides = array<i32>} : memref<1x4x256xf32, #tpu.memory_space<vmem>>, vector<1x4x256xf32>,
    return
  }
  func.func @transform_0(%arg0: i32, %arg1: i32) -> (i32, i32, i32) {
    %c0_i32 = arith.constant 0 : i32
    %c0_i32_0 = arith.constant 0 : i32
    return %arg0, %c0_i32, %arg1 : i32, i32, i32
  }
  func.func @transform_1(%arg0: i32, %arg1: i32) -> (i32, i32, i32) {
    %c0_i32 = arith.constant 0 : i32
    %c0_i32_0 = arith.constant 0 : i32
    return %arg0, %c0_i32, %arg1 : i32, i32, i32
  }
  func.func @transform_2(%arg0: i32, %arg1: i32) -> (i32, i32) {
    %c0_i32 = arith.constant 0 : i32
    %c0_i32_0 = arith.constant 0 : i32
    %c0_i32_1 = arith.constant 0 : i32
    return %c0_i32, %c0_i32_0 : i32, i32
  }
  func.func @transform_3(%arg0: i32, %arg1: i32) -> (i32, i32) {
    %c0_i32 = arith.constant 0 : i32
    %c0_i32_0 = arith.constant 0 : i32
    %c0_i32_1 = arith.constant 0 : i32
    return %c0_i32, %c0_i32_0 : i32, i32
  }
  func.func @transform_4(%arg0: i32, %arg1: i32) -> (i32, i32, i32) {
    %c0_i32 = arith.constant 0 : i32
    %c0_i32_0 = arith.constant 0 : i32
    return %arg0, %c0_i32, %arg1 : i32, i32, i32
  }
}

</mosaic_0001>

<llo_original>
// kernel: token_mixer_forward.3
$region0: #{token_mixer_forward.3}
  #allocation0 [shape = 'u32[]', space=smem, size = 0x4, offset = 0x4, fixed_abs, tag = 'smem constant byte address 0x4 - core index']
  #allocation1 [shape = 'u32[72,128]{1,0:T(1,128)}', space=vmem, size = 0x9000, scoped, tag = 'internal scratch']
  %s0 = inlined_call_operand.vmem [shape: f32[2,4,256], index: 0, kind: input, shape index: {}]
  %s1 = inlined_call_operand.vmem [shape: f32[8,4], index: 1, kind: input, shape index: {}]
  %s2 = inlined_call_operand.vmem [shape: f32[8,1], index: 2, kind: input, shape index: {}]
  %s3 = inlined_call_operand.vmem [shape: f32[2,8,256], index: 3, kind: output, shape index: {}]
  %s4 = sld [smem:[#allocation0]]
  $region45: #{token_mixer_forward.3} parent=0
    _
  %s6 = ssub.s32 1, %s4
  %s7 = scalar_select 0, %s6, %s4
  loop: start=0, step=1, limit=4
  $region2: #{token_mixer_forward.3} parent=0 // loop_pre_header
    _
  $region3: #{token_mixer_forward.3} parent=0 // loop_header
    %s9 = sphi 0, %s13
    %p10 = scmp.ge.s32.totalorder %s9, 4
    %s16 = sphi 0, %s28
    %s17 = sphi 0, %s24
    %s18 = sphi 0, %s16
    %s19 = sphi 0, %s17
    %s20 = sphi 0, %s18
    %s21 = sphi 0, %s19
    %s33 = sphi 0, %s35
    %s36 = sphi 0, %s33
    %s37 = sphi 0, %s36
    %s53 = sphi 0, %s37
    %s57 = sphi 0, %s57
    %s59 = sphi 0, %s57
    %s60 = sphi 0, %s59
    %s74 = sphi 0, %s60
    %s78 = sphi 0, %s78
    %s80 = sphi 0, %s78
    %s81 = sphi 0, %s80
    %s95 = sphi 0, %s81
    %s103 = sphi 0, %s105
    %s106 = sphi 0, %s103
    %s107 = sphi 0, %s106
    %s123 = sphi 0, %s107
  $region4: #{token_mixer_forward.3} parent=0 // loop_header_branch
    %12 = sbr.rel (%p10) target = $region8
  $region5: #{token_mixer_forward.3} parent=0 // loop_body
    %s14 = ssub.s32 %s9, 1
    %s15 = ssub.s32 %s9, 2
    %s22 = sadd.s32 1, %s17
    %p23 = scmp.ge.s32.totalorder %s22, 1
    %s24 = scalar_select %p23, 0, %s22
    %s25 = sadd.s32 1, %s16
    %s26 = scalar_select %p23, %s25, %s16
    %p27 = scmp.ge.s32.totalorder %s26, 2
    %s28 = scalar_select %p27, 0, %s26
    %s29 = ssub.s32 %s16, %s28
    %s30 = ssub.s32 %s17, %s24
    %s31 = sor.u32 %s29, %s30
    %p32 = scmp.eq.s32.totalorder %s31, 0
    %s34 = sadd.s32 %s33, 1
    %s35 = scalar_select %p32, %s33, %s34
    %p38 = pneg %p32
    %p39 = scmp.eq.s32.totalorder %s9, 1
    %p40 = por %p38, %p39
    %p41 = scmp.ne.s32.totalorder %s33, %s36
    %p42 = scmp.eq.s32.totalorder %s9, 0
    %p43 = por %p41, %p42
    %p44 = scmp.ne.s32.totalorder %s33, %s36
    %p45 = scmp.eq.s32.totalorder %s14, 1
    %p46 = por %p44, %p45
    %p47 = scmp.ne.s32.totalorder %s36, %s37
    %p48 = scmp.eq.s32.totalorder %s14, 0
    %p49 = por %p47, %p48
    %p50 = scmp.ne.s32.totalorder %s36, %s37
    %p51 = scmp.eq.s32.totalorder %s15, 1
    %p52 = por %p50, %p51
    %p54 = scmp.ne.s32.totalorder %s37, %s53
    %p55 = scmp.eq.s32.totalorder %s15, 0
    %p56 = por %p54, %p55
    %s58 = sadd.s32 %s57, 1
    %p61 = scmp.eq.s32.totalorder %s9, 1
    %p62 = scmp.ne.s32.totalorder %s57, %s59
    %p63 = scmp.eq.s32.totalorder %s9, 0
    %p64 = por %p62, %p63
    %p65 = scmp.ne.s32.totalorder %s57, %s59
    %p66 = scmp.eq.s32.totalorder %s14, 1
    %p67 = por %p65, %p66
    %p68 = scmp.ne.s32.totalorder %s59, %s60
    %p69 = scmp.eq.s32.totalorder %s14, 0
    %p70 = por %p68, %p69
    %p71 = scmp.ne.s32.totalorder %s59, %s60
    %p72 = scmp.eq.s32.totalorder %s15, 1
    %p73 = por %p71, %p72
    %p75 = scmp.ne.s32.totalorder %s60, %s74
    %p76 = scmp.eq.s32.totalorder %s15, 0
    %p77 = por %p75, %p76
    %s79 = sadd.s32 %s78, 1
    %p82 = scmp.eq.s32.totalorder %s9, 1
    %p83 = scmp.ne.s32.totalorder %s78, %s80
    %p84 = scmp.eq.s32.totalorder %s9, 0
    %p85 = por %p83, %p84
    %p86 = scmp.ne.s32.totalorder %s78, %s80
    %p87 = scmp.eq.s32.totalorder %s14, 1
    %p88 = por %p86, %p87
    %p89 = scmp.ne.s32.totalorder %s80, %s81
    %p90 = scmp.eq.s32.totalorder %s14, 0
    %p91 = por %p89, %p90
    %p92 = scmp.ne.s32.totalorder %s80, %s81
    %p93 = scmp.eq.s32.totalorder %s15, 1
    %p94 = por %p92, %p93
    %p96 = scmp.ne.s32.totalorder %s81, %s95
    %p97 = scmp.eq.s32.totalorder %s15, 0
    %p98 = por %p96, %p97
    %s99 = ssub.s32 %s16, %s28
    %s100 = ssub.s32 %s17, %s24
    %s101 = sor.u32 %s99, %s100
    %p102 = scmp.eq.s32.totalorder %s101, 0
    %s104 = sadd.s32 %s103, 1
    %s105 = scalar_select %p102, %s103, %s104
    %p108 = pneg %p102
    %p109 = scmp.eq.s32.totalorder %s9, 1
    %p110 = por %p108, %p109
    %p111 = scmp.ne.s32.totalorder %s103, %s106
    %p112 = scmp.eq.s32.totalorder %s9, 0
    %p113 = por %p111, %p112
    %p114 = scmp.ne.s32.totalorder %s103, %s106
    %p115 = scmp.eq.s32.totalorder %s14, 1
    %p116 = por %p114, %p115
    %p117 = scmp.ne.s32.totalorder %s106, %s107
    %p118 = scmp.eq.s32.totalorder %s14, 0
    %p119 = por %p117, %p118
    %p120 = scmp.ne.s32.totalorder %s106, %s107
    %p121 = scmp.eq.s32.totalorder %s15, 1
    %p122 = por %p120, %p121
    %p124 = scmp.ne.s32.totalorder %s107, %s123
    %p125 = scmp.eq.s32.totalorder %s15, 0
    %p126 = por %p124, %p125
    %p127 = scmp.le.s32.totalorder 1, %s9
    %p128 = scmp.lt.s32.totalorder %s9, 3
    %p129 = pnand %p127, %p128
    %p130 = pneg %p129
    // Predicated region
    $region9: #{token_mixer_forward.3} parent=5 // pred_check
      _
    $region10: #{token_mixer_forward.3} parent=5 // pred_check_branch
      %132 = sbr.rel (%p129) target = $region12
    $region11: #{token_mixer_forward.3} parent=5 // pred_region
      %s133 = ssub.s32 %s9, 1
      // Predicated region
      $region13: #{token_mixer_forward.3} parent=11 // pred_check
        %p134 = pneg %p70
      $region14: #{token_mixer_forward.3} parent=11 // pred_check_branch
        %136 = sbr.rel (%p134) target = $region16
      $region15: #{token_mixer_forward.3} parent=11 // pred_region
        _
      $region16: #{token_mixer_forward.3} parent=11 // pred_fallthru
        _
      // Predicated region
      $region17: #{token_mixer_forward.3} parent=11 // pred_check
        %p137 = pneg %p91
      $region18: #{token_mixer_forward.3} parent=11 // pred_check_branch
        %139 = sbr.rel (%p137) target = $region20
      $region19: #{token_mixer_forward.3} parent=11 // pred_region
        _
      $region20: #{token_mixer_forward.3} parent=11 // pred_fallthru
        _
    $region12: #{token_mixer_forward.3} parent=5 // pred_fallthru
      _
    %p140 = scmp.lt.s32.totalorder %s9, 2
    // Predicated region
    $region21: #{token_mixer_forward.3} parent=5 // pred_check
      %p141 = pneg %p140
    $region22: #{token_mixer_forward.3} parent=5 // pred_check_branch
      %143 = sbr.rel (%p141) target = $region24
    $region23: #{token_mixer_forward.3} parent=5 // pred_region
      // Predicated region
      $region25: #{token_mixer_forward.3} parent=23 // pred_check
        %p144 = pneg %p43
      $region26: #{token_mixer_forward.3} parent=23 // pred_check_branch
        %146 = sbr.rel (%p144) target = $region28
      $region27: #{token_mixer_forward.3} parent=23 // pred_region
        %s147 = smul.u32 2, %s17
        %p148 = scmp.lt.s32.totalorder %s16, 1
        %s149 = scalar_select %p148, %s16, 1
        %p150 = scmp.lt.s32.totalorder %s147, 1
        %s151 = scalar_select %p150, %s147, 1
        %s152 = smul.addr %s149, 2
        %s153 = sadd.s32 %s151, %s152
        %s154 = smul.addr %s153, 4
        %s155 = scalar_lea.vmem %s0, %s154
        %s156 = smul.u32 2, %s17
      $region28: #{token_mixer_forward.3} parent=23 // pred_fallthru
        _
    $region24: #{token_mixer_forward.3} parent=5 // pred_fallthru
      _
    %p157 = scmp.le.s32.totalorder 1, %s9
    %p158 = scmp.lt.s32.totalorder %s9, 3
    %p159 = pnand %p157, %p158
    %p160 = pneg %p159
    // Predicated region
    $region29: #{token_mixer_forward.3} parent=5 // pred_check
      _
    $region30: #{token_mixer_forward.3} parent=5 // pred_check_branch
      %162 = sbr.rel (%p159) target = $region32
    $region31: #{token_mixer_forward.3} parent=5 // pred_region
      %s163 = ssub.s32 %s9, 1
      %s164 = smul.u32 2, %s19
      %p165 = scmp.lt.s32.totalorder %s18, 1
      %s166 = scalar_select %p165, %s18, 1
      %p167 = scmp.lt.s32.totalorder %s164, 1
      %s168 = scalar_select %p167, %s164, 1
      %s169 = smul.addr %s166, 2
      %s170 = sadd.s32 %s168, %s169
      %s171 = smul.addr %s170, 4
      %s172 = scalar_lea.vmem %s0, %s171
      %p173 = pneg %p49
      %p174 = pneg %p46
      %p175 = pneg %p70
      %p176 = pneg %p67
      %p177 = pneg %p91
      %p178 = pneg %p88
      %p179 = pneg %p119
      %p180 = pneg %p116
      %s181 = smul.u32 2, %s19
      %p182 = scmp.lt.s32.totalorder %s18, 1
      %s183 = scalar_select %p182, %s18, 1
      %p184 = scmp.lt.s32.totalorder %s181, 1
      %s185 = scalar_select %p184, %s181, 1
      %s186 = smul.addr %s183, 2
      %s187 = sadd.s32 %s185, %s186
      %s188 = smul.addr %s187, 8
      %s189 = scalar_lea.vmem %s3, %s188
      %s190 = smul.u32 2, %s19
      %p191 = scmp.lt.s32.totalorder %s18, 1
      %s192 = scalar_select %p191, %s18, 1
      %p193 = scmp.lt.s32.totalorder %s190, 1
      %s194 = scalar_select %p193, %s190, 1
      %s195 = smul.addr %s192, 2
      %s196 = sadd.s32 %s194, %s195
      %s197 = smul.addr %s196, 4
      %s198 = scalar_lea.vmem %s0, %s197
      %s199 = smul.u32 2, %s19
      %s200 = smul.u32 2, %s19
      %p201 = scmp.lt.s32.totalorder %s18, 1
      %s202 = scalar_select %p201, %s18, 1
      %p203 = scmp.lt.s32.totalorder %s200, 1
      %s204 = scalar_select %p203, %s200, 1
      %s205 = smul.addr %s202, 2
      %s206 = sadd.s32 %s204, %s205
      %s207 = smul.addr %s206, 8
      %s208 = scalar_lea.vmem %s3, %s207
      %s209 = smul.u32 2, %s19
      %v211 = vld [vmem:[%s1] sm:$0xff]
      %v212 = vld [vmem:[%s198] sm:$0xff]
      %v213 = vpack.c.bf16 %v211, %v211
      %215 = vst [vmem:[#allocation1] ss:$2 sm:$0xff] %v212
      %v216 = vld.sshfl [vmem:[#allocation1] sm:$0xff pattern:$0x75316420]
      %v217 = vld.sshfl [vmem:[#allocation1 + $0x8] sm:$0xff pattern:$0x75316420]
      %v220 = vpack.c.bf16 %v216, %v216
      %v221 = vpack.c.bf16 %v217, %v217
      %v222 = vld [vmem:[%s2] sm:$0xff]
      %224 = vset.pattern.permute.xlu0 0
      %225 = vperm.xlu0 %224, %v222
      %v226 = vpop.permute.xlu0 %225
      %vm228 = vcmask 31744
      %v230 = vsel %vm228, %v213, 0
      %vm232 = vcmask 1041408
      %v234 = vsel %vm232, %v220, 0
      %v237 = vsel %vm232, %v221, 0
      %239 = vmatpush.bf16.msra.mxu0 0
      %240 = vmatpush.bf16.msra.mxu0 0
      %241 = vmatpush.bf16.msra.mxu0 0
      %242 = vmatpush.bf16.msra.mxu0 0
      %243 = vmatpush.bf16.msra.mxu0 0
      %244 = vmatpush.bf16.msra.mxu0 0
      %245 = vmatpush.bf16.msra.mxu0 0
      %246 = vmatpush.bf16.msra.mxu0 %v234
      %247 = vmatmul.bf16.gmra.mxu0 %v230
      %v248 = vpop.f32.mrf.mxu0
      %v249 = vadd.f32 %v226, %v248
      %v250 = vpop.f32.mrf.mxu0
      %251 = vdwg.mxu0
      %252 = vmatpush.bf16.msra.mxu0 0
      %253 = vmatpush.bf16.msra.mxu0 0
      %254 = vmatpush.bf16.msra.mxu0 0
      %255 = vmatpush.bf16.msra.mxu0 0
      %256 = vmatpush.bf16.msra.mxu0 0
      %257 = vmatpush.bf16.msra.mxu0 0
      %258 = vmatpush.bf16.msra.mxu0 0
      %259 = vmatpush.bf16.msra.mxu0 %v237
      %260 = vmatmul.bf16.gmra.mxu0 %v230
      %v261 = vpop.f32.mrf.mxu0
      %v262 = vadd.f32 %v226, %v261
      %v263 = vpop.f32.mrf.mxu0
      %264 = vdwg.mxu0
      %v265 = vmul.f32 %v249, 0.5
      %v266 = vmul.f32 %v262, 0.5
      %v267 = vmul.f32 %v249, 0.044715
      %v268 = vmul.f32 %v262, 0.044715
      %v269 = vmul.f32 %v267, %v249
      %v270 = vmul.f32 %v268, %v262
      %v271 = vmul.f32 %v269, %v249
      %v272 = vmul.f32 %v270, %v262
      %v273 = vadd.f32 %v249, %v271
      %v274 = vadd.f32 %v262, %v272
      %v275 = vmul.f32 %v273, 0.7978846
      %v276 = vmul.f32 %v274, 0.7978846
      %v277 = vtanh.pop %v275
      %v278 = vtanh.pop %v276
      %v279 = vadd.f32 %v277, 1.0
      %v280 = vadd.f32 %v278, 1.0
      %v281 = vmul.f32 %v265, %v279
      %v282 = vmul.f32 %v266, %v280
      %283 = vst [vmem:[%s208] sm:$0xff] %v281
      %284 = vst [vmem:[%s208 + $0x8] sm:$0xff] %v282
      %s285 = smul.u32 2, %s19
      %p286 = scmp.lt.s32.totalorder %s18, 1
      %s287 = scalar_select %p286, %s18, 1
      %p288 = scmp.lt.s32.totalorder %s285, 1
      %s289 = scalar_select %p288, %s285, 1
      %s290 = smul.addr %s287, 2
      %s291 = sadd.s32 %s289, %s290
      %s292 = smul.addr %s291, 8
      %s293 = scalar_lea.vmem %s3, %s292
      // Predicated region
      $region33: #{token_mixer_forward.3} parent=31 // pred_check
        %p294 = pneg %p116
      $region34: #{token_mixer_forward.3} parent=31 // pred_check_branch
        %296 = sbr.rel (%p294) target = $region36
      $region35: #{token_mixer_forward.3} parent=31 // pred_region
        %s297 = smul.u32 2, %s19
      $region36: #{token_mixer_forward.3} parent=31 // pred_fallthru
        _
    $region32: #{token_mixer_forward.3} parent=5 // pred_fallthru
      _
    %p298 = scmp.le.s32.totalorder 2, %s9
    // Predicated region
    $region37: #{token_mixer_forward.3} parent=5 // pred_check
      %p299 = pneg %p298
    $region38: #{token_mixer_forward.3} parent=5 // pred_check_branch
      %301 = sbr.rel (%p299) target = $region40
    $region39: #{token_mixer_forward.3} parent=5 // pred_region
      %s302 = ssub.s32 %s9, 2
      // Predicated region
      $region41: #{token_mixer_forward.3} parent=39 // pred_check
        %p303 = pneg %p122
      $region42: #{token_mixer_forward.3} parent=39 // pred_check_branch
        %305 = sbr.rel (%p303) target = $region44
      $region43: #{token_mixer_forward.3} parent=39 // pred_region
        %s306 = smul.u32 2, %s21
        %p307 = scmp.lt.s32.totalorder %s20, 1
        %s308 = scalar_select %p307, %s20, 1
        %p309 = scmp.lt.s32.totalorder %s306, 1
        %s310 = scalar_select %p309, %s306, 1
        %s311 = smul.addr %s308, 2
        %s312 = sadd.s32 %s310, %s311
        %s313 = smul.addr %s312, 8
        %s314 = scalar_lea.vmem %s3, %s313
      $region44: #{token_mixer_forward.3} parent=39 // pred_fallthru
        _
    $region40: #{token_mixer_forward.3} parent=5 // pred_fallthru
      _
  $region6: #{token_mixer_forward.3} parent=0 // loop_footer
    %s13 = sadd.s32 1, %s9
  $region7: #{token_mixer_forward.3} parent=0 // loop_footer_branch
    %8 = sbr.rel target = $region3
  $region8: #{token_mixer_forward.3} parent=0 // loop_exit
    _

// kernel: reverse.0
$region0: #{reverse.0}
  %s0 = inlined_call_operand.vmem [shape: f32[2,8,16,7], index: 0, kind: input, shape index: {}]
  %s1 = inlined_call_operand.vmem [shape: f32[2,8,16,7], index: 1, kind: output, shape index: {}]
  $region1: #{reverse.0} parent=0
    #allocation0 [shape = 'u8[131072]{0}', space=vmem, size = 0x20000, scoped, tag = 'operand span for operand 0']
    #allocation1 [shape = 'u8[65536]{0}', space=vmem, size = 0x10000, scoped, tag = 'operand span for operand 1']
    %s2 = scalar_lea.vmem [#allocation0], 8
    // Predicated region
    $region2: #{reverse.0} parent=1 // pred_check
      _
    $region3: #{reverse.0} parent=1 // pred_check_branch
      %4 = sbr.rel (0) target = $region5
    $region4: #{reverse.0} parent=1 // pred_region
      // Predicated region
      $region6: #{reverse.0} parent=4 // pred_check
        _
      $region7: #{reverse.0} parent=4 // pred_check_branch
        %6 = sbr.rel (0) target = $region9
      $region8: #{reverse.0} parent=4 // pred_region
        // Predicated region
        $region21: #{reverse.0} parent=8 // pred_check
          _
        $region22: #{reverse.0} parent=8 // pred_check_branch
          %52 = sbr.rel (0) target = $region24
        $region23: #{reverse.0} parent=8 // pred_region
          loop: start=0, step=1, limit=1
          $region25: #{reverse.0} parent=23 // loop_pre_header
            _
          $region26: #{reverse.0} parent=23 // loop_header
            %s54 = sphi 0, %s58
            %p55 = scmp.ge.s32.totalorder %s54, 1
            %s59 = sphi %s0, %s0
            %s60 = sphi %s2, %s2
          $region27: #{reverse.0} parent=23 // loop_header_branch
            %57 = sbr.rel (%p55) target = $region31
          $region28: #{reverse.0} parent=23 // loop_body
            %v61 = vld [vmem:[%s59] sm:$0xff]
            %62 = vst [vmem:[%s60] sm:$0xff] %v61
            %v63 = vld [vmem:[%s59 + $0x8] sm:$0xff]
            %64 = vst [vmem:[%s60 + $0x10] sm:$0xff] %v63
            %v65 = vld [vmem:[%s59 + $0x10] sm:$0xff]
            %66 = vst [vmem:[%s60 + $0x20] sm:$0xff] %v65
            %v67 = vld [vmem:[%s59 + $0x18] sm:$0xff]
            %68 = vst [vmem:[%s60 + $0x30] sm:$0xff] %v67
            %v69 = vld [vmem:[%s59 + $0x20] sm:$0xff]
            %70 = vst [vmem:[%s60 + $0x40] sm:$0xff] %v69
            %v71 = vld [vmem:[%s59 + $0x28] sm:$0xff]
            %72 = vst [vmem:[%s60 + $0x50] sm:$0xff] %v71
            %v73 = vld [vmem:[%s59 + $0x30] sm:$0xff]
            %74 = vst [vmem:[%s60 + $0x60] sm:$0xff] %v73
            %v75 = vld [vmem:[%s59 + $0x38] sm:$0xff]
            %76 = vst [vmem:[%s60 + $0x70] sm:$0xff] %v75
            %v77 = vld [vmem:[%s59 + $0x40] sm:$0xff]
            %78 = vst [vmem:[%s60 + $0x80] sm:$0xff] %v77
            %v79 = vld [vmem:[%s59 + $0x48] sm:$0xff]
            %80 = vst [vmem:[%s60 + $0x90] sm:$0xff] %v79
            %v81 = vld [vmem:[%s59 + $0x50] sm:$0xff]
            %82 = vst [vmem:[%s60 + $0xa0] sm:$0xff] %v81
            %v83 = vld [vmem:[%s59 + $0x58] sm:$0xff]
            %84 = vst [vmem:[%s60 + $0xb0] sm:$0xff] %v83
            %v85 = vld [vmem:[%s59 + $0x60] sm:$0xff]
            %86 = vst [vmem:[%s60 + $0xc0] sm:$0xff] %v85
            %v87 = vld [vmem:[%s59 + $0x68] sm:$0xff]
            %88 = vst [vmem:[%s60 + $0xd0] sm:$0xff] %v87
            %v89 = vld [vmem:[%s59 + $0x70] sm:$0xff]
            %90 = vst [vmem:[%s60 + $0xe0] sm:$0xff] %v89
            %v91 = vld [vmem:[%s59 + $0x78] sm:$0xff]
            %92 = vst [vmem:[%s60 + $0xf0] sm:$0xff] %v91
          $region29: #{reverse.0} parent=23 // loop_footer
            %s58 = sadd.s32 1, %s54
          $region30: #{reverse.0} parent=23 // loop_footer_branch
            %53 = sbr.rel target = $region26
          $region31: #{reverse.0} parent=23 // loop_exit
            _
        $region24: #{reverse.0} parent=8 // pred_fallthru
          _
        // Predicated region
        $region32: #{reverse.0} parent=8 // pred_check
          _
        $region33: #{reverse.0} parent=8 // pred_check_branch
          %94 = sbr.rel target = $region35
        $region34: #{reverse.0} parent=8 // pred_region
          _
        $region35: #{reverse.0} parent=8 // pred_fallthru
          _
      $region9: #{reverse.0} parent=4 // pred_fallthru
        _
      // Predicated region
      $region10: #{reverse.0} parent=4 // pred_check
        _
      $region11: #{reverse.0} parent=4 // pred_check_branch
        %8 = sbr.rel target = $region13
      $region12: #{reverse.0} parent=4 // pred_region
        %s10 = ssub.s32 256, 1
        loop: start=0, step=1, limit=1
        $region14: #{reverse.0} parent=12 // loop_pre_header
          _
        $region15: #{reverse.0} parent=12 // loop_header
          %s12 = sphi 0, %s16
          %p13 = scmp.ge.s32.totalorder %s12, 1
          %s17 = sphi %s0, %s0
          %s18 = sphi %s2, %s2
        $region16: #{reverse.0} parent=12 // loop_header_branch
          %15 = sbr.rel (%p13) target = $region20
        $region17: #{reverse.0} parent=12 // loop_body
          %v19 = vld [vmem:[%s17] sm:%s10]
          %20 = vst [vmem:[%s18] sm:%s10] %v19
          %v21 = vld [vmem:[%s17 + $0x8] sm:%s10]
          %22 = vst [vmem:[%s18 + $0x10] sm:%s10] %v21
          %v23 = vld [vmem:[%s17 + $0x10] sm:%s10]
          %24 = vst [vmem:[%s18 + $0x20] sm:%s10] %v23
          %v25 = vld [vmem:[%s17 + $0x18] sm:%s10]
          %26 = vst [vmem:[%s18 + $0x30] sm:%s10] %v25
          %v27 = vld [vmem:[%s17 + $0x20] sm:%s10]
          %28 = vst [vmem:[%s18 + $0x40] sm:%s10] %v27
          %v29 = vld [vmem:[%s17 + $0x28] sm:%s10]
          %30 = vst [vmem:[%s18 + $0x50] sm:%s10] %v29
          %v31 = vld [vmem:[%s17 + $0x30] sm:%s10]
          %32 = vst [vmem:[%s18 + $0x60] sm:%s10] %v31
          %v33 = vld [vmem:[%s17 + $0x38] sm:%s10]
          %34 = vst [vmem:[%s18 + $0x70] sm:%s10] %v33
          %v35 = vld [vmem:[%s17 + $0x40] sm:%s10]
          %36 = vst [vmem:[%s18 + $0x80] sm:%s10] %v35
          %v37 = vld [vmem:[%s17 + $0x48] sm:%s10]
          %38 = vst [vmem:[%s18 + $0x90] sm:%s10] %v37
          %v39 = vld [vmem:[%s17 + $0x50] sm:%s10]
          %40 = vst [vmem:[%s18 + $0xa0] sm:%s10] %v39
          %v41 = vld [vmem:[%s17 + $0x58] sm:%s10]
          %42 = vst [vmem:[%s18 + $0xb0] sm:%s10] %v41
          %v43 = vld [vmem:[%s17 + $0x60] sm:%s10]
          %44 = vst [vmem:[%s18 + $0xc0] sm:%s10] %v43
          %v45 = vld [vmem:[%s17 + $0x68] sm:%s10]
          %46 = vst [vmem:[%s18 + $0xd0] sm:%s10] %v45
          %v47 = vld [vmem:[%s17 + $0x70] sm:%s10]
          %48 = vst [vmem:[%s18 + $0xe0] sm:%s10] %v47
          %v49 = vld [vmem:[%s17 + $0x78] sm:%s10]
          %50 = vst [vmem:[%s18 + $0xf0] sm:%s10] %v49
        $region18: #{reverse.0} parent=12 // loop_footer
          %s16 = sadd.s32 1, %s12
        $region19: #{reverse.0} parent=12 // loop_footer_branch
          %11 = sbr.rel target = $region15
        $region20: #{reverse.0} parent=12 // loop_exit
          _
      $region13: #{reverse.0} parent=4 // pred_fallthru
        _
    $region5: #{reverse.0} parent=1 // pred_fallthru
      _
    %95 = vnop
    %s96 = scalar_lea.vmem [#allocation0], 7
    %v97 = vld [vmem:[%s96] ss:$-1 sm:$0xff]
    %v98 = vrot.slane %v97, 1
    %99 = vst [vmem:[#allocation1] sm:$0xff] %v98
    %s100 = scalar_lea.vmem [#allocation0], 8
    %s101 = scalar_lea.vmem %s100, 7 [#allocation0]
    %v102 = vld [vmem:[%s101] ss:$-1 sm:$0xff]
    %v103 = vrot.slane %v102, 1
    %v104 = vlaneseq
    %v105 = vshrl.u32 %v104, 7
    %vm106 = vcmp.lt.s32.totalorder %v105, 7
    %107 = vst.msk [vmem:[#allocation1] sm:$0xff] %vm106, %v103
    %s108 = scalar_lea.vmem [#allocation1], 8
    %s109 = scalar_lea.vmem [#allocation0], 16
    %s110 = scalar_lea.vmem %s109, 7 [#allocation0]
    %v111 = vld [vmem:[%s110] ss:$-1 sm:$0xff]
    %v112 = vrot.slane %v111, 1
    %113 = vst [vmem:[%s108] sm:$0xff] %v112
    %s114 = scalar_lea.vmem %s109, 8 [#allocation0]
    %s115 = scalar_lea.vmem %s114, 7 [#allocation0]
    %v116 = vld [vmem:[%s115] ss:$-1 sm:$0xff]
    %v117 = vrot.slane %v116, 1
    %v118 = vlaneseq
    %v119 = vshrl.u32 %v118, 7
    %vm120 = vcmp.lt.s32.totalorder %v119, 7
    %121 = vst.msk [vmem:[%s108] sm:$0xff] %vm120, %v117
    %s122 = scalar_lea.vmem [#allocation1], 16
    %s123 = scalar_lea.vmem [#allocation0], 32
    %s124 = scalar_lea.vmem %s123, 7 [#allocation0]
    %v125 = vld [vmem:[%s124] ss:$-1 sm:$0xff]
    %v126 = vrot.slane %v125, 1
    %127 = vst [vmem:[%s122] sm:$0xff] %v126
    %s128 = scalar_lea.vmem %s123, 8 [#allocation0]
    %s129 = scalar_lea.vmem %s128, 7 [#allocation0]
    %v130 = vld [vmem:[%s129] ss:$-1 sm:$0xff]
    %v131 = vrot.slane %v130, 1
    %v132 = vlaneseq
    %v133 = vshrl.u32 %v132, 7
    %vm134 = vcmp.lt.s32.totalorder %v133, 7
    %135 = vst.msk [vmem:[%s122] sm:$0xff] %vm134, %v131
    %s136 = scalar_lea.vmem [#allocation1], 24
    %s137 = scalar_lea.vmem [#allocation0], 48
    %s138 = scalar_lea.vmem %s137, 7 [#allocation0]
    %v139 = vld [vmem:[%s138] ss:$-1 sm:$0xff]
    %v140 = vrot.slane %v139, 1
    %141 = vst [vmem:[%s136] sm:$0xff] %v140
    %s142 = scalar_lea.vmem %s137, 8 [#allocation0]
    %s143 = scalar_lea.vmem %s142, 7 [#allocation0]
    %v144 = vld [vmem:[%s143] ss:$-1 sm:$0xff]
    %v145 = vrot.slane %v144, 1
    %v146 = vlaneseq
    %v147 = vshrl.u32 %v146, 7
    %vm148 = vcmp.lt.s32.totalorder %v147, 7
    %149 = vst.msk [vmem:[%s136] sm:$0xff] %vm148, %v145
    %s150 = scalar_lea.vmem [#allocation1], 32
    %s151 = scalar_lea.vmem [#allocation0], 64
    %s152 = scalar_lea.vmem %s151, 7 [#allocation0]
    %v153 = vld [vmem:[%s152] ss:$-1 sm:$0xff]
    %v154 = vrot.slane %v153, 1
    %155 = vst [vmem:[%s150] sm:$0xff] %v154
    %s156 = scalar_lea.vmem %s151, 8 [#allocation0]
    %s157 = scalar_lea.vmem %s156, 7 [#allocation0]
    %v158 = vld [vmem:[%s157] ss:$-1 sm:$0xff]
    %v159 = vrot.slane %v158, 1
    %v160 = vlaneseq
    %v161 = vshrl.u32 %v160, 7
    %vm162 = vcmp.lt.s32.totalorder %v161, 7
    %163 = vst.msk [vmem:[%s150] sm:$0xff] %vm162, %v159
    %s164 = scalar_lea.vmem [#allocation1], 40
    %s165 = scalar_lea.vmem [#allocation0], 80
    %s166 = scalar_lea.vmem %s165, 7 [#allocation0]
    %v167 = vld [vmem:[%s166] ss:$-1 sm:$0xff]
    %v168 = vrot.slane %v167, 1
    %169 = vst [vmem:[%s164] sm:$0xff] %v168
    %s170 = scalar_lea.vmem %s165, 8 [#allocation0]
    %s171 = scalar_lea.vmem %s170, 7 [#allocation0]
    %v172 = vld [vmem:[%s171] ss:$-1 sm:$0xff]
    %v173 = vrot.slane %v172, 1
    %v174 = vlaneseq
    %v175 = vshrl.u32 %v174, 7
    %vm176 = vcmp.lt.s32.totalorder %v175, 7
    %177 = vst.msk [vmem:[%s164] sm:$0xff] %vm176, %v173
    %s178 = scalar_lea.vmem [#allocation1], 48
    %s179 = scalar_lea.vmem [#allocation0], 96
    %s180 = scalar_lea.vmem %s179, 7 [#allocation0]
    %v181 = vld [vmem:[%s180] ss:$-1 sm:$0xff]
    %v182 = vrot.slane %v181, 1
    %183 = vst [vmem:[%s178] sm:$0xff] %v182
    %s184 = scalar_lea.vmem %s179, 8 [#allocation0]
    %s185 = scalar_lea.vmem %s184, 7 [#allocation0]
    %v186 = vld [vmem:[%s185] ss:$-1 sm:$0xff]
    %v187 = vrot.slane %v186, 1
    %v188 = vlaneseq
    %v189 = vshrl.u32 %v188, 7
    %vm190 = vcmp.lt.s32.totalorder %v189, 7
    %191 = vst.msk [vmem:[%s178] sm:$0xff] %vm190, %v187
    %s192 = scalar_lea.vmem [#allocation1], 56
    %s193 = scalar_lea.vmem [#allocation0], 112
    %s194 = scalar_lea.vmem %s193, 7 [#allocation0]
    %v195 = vld [vmem:[%s194] ss:$-1 sm:$0xff]
    %v196 = vrot.slane %v195, 1
    %197 = vst [vmem:[%s192] sm:$0xff] %v196
    %s198 = scalar_lea.vmem %s193, 8 [#allocation0]
    %s199 = scalar_lea.vmem %s198, 7 [#allocation0]
    %v200 = vld [vmem:[%s199] ss:$-1 sm:$0xff]
    %v201 = vrot.slane %v200, 1
    %v202 = vlaneseq
    %v203 = vshrl.u32 %v202, 7
    %vm204 = vcmp.lt.s32.totalorder %v203, 7
    %205 = vst.msk [vmem:[%s192] sm:$0xff] %vm204, %v201
    %s206 = scalar_lea.vmem [#allocation1], 64
    %s207 = scalar_lea.vmem [#allocation0], 128
    %s208 = scalar_lea.vmem %s207, 7 [#allocation0]
    %v209 = vld [vmem:[%s208] ss:$-1 sm:$0xff]
    %v210 = vrot.slane %v209, 1
    %211 = vst [vmem:[%s206] sm:$0xff] %v210
    %s212 = scalar_lea.vmem %s207, 8 [#allocation0]
    %s213 = scalar_lea.vmem %s212, 7 [#allocation0]
    %v214 = vld [vmem:[%s213] ss:$-1 sm:$0xff]
    %v215 = vrot.slane %v214, 1
    %v216 = vlaneseq
    %v217 = vshrl.u32 %v216, 7
    %vm218 = vcmp.lt.s32.totalorder %v217, 7
    %219 = vst.msk [vmem:[%s206] sm:$0xff] %vm218, %v215
    %s220 = scalar_lea.vmem [#allocation1], 72
    %s221 = scalar_lea.vmem [#allocation0], 144
    %s222 = scalar_lea.vmem %s221, 7 [#allocation0]
    %v223 = vld [vmem:[%s222] ss:$-1 sm:$0xff]
    %v224 = vrot.slane %v223, 1
    %225 = vst [vmem:[%s220] sm:$0xff] %v224
    %s226 = scalar_lea.vmem %s221, 8 [#allocation0]
    %s227 = scalar_lea.vmem %s226, 7 [#allocation0]
    %v228 = vld [vmem:[%s227] ss:$-1 sm:$0xff]
    %v229 = vrot.slane %v228, 1
    %v230 = vlaneseq
    %v231 = vshrl.u32 %v230, 7
    %vm232 = vcmp.lt.s32.totalorder %v231, 7
    %233 = vst.msk [vmem:[%s220] sm:$0xff] %vm232, %v229
    %s234 = scalar_lea.vmem [#allocation1], 80
    %s235 = scalar_lea.vmem [#allocation0], 160
    %s236 = scalar_lea.vmem %s235, 7 [#allocation0]
    %v237 = vld [vmem:[%s236] ss:$-1 sm:$0xff]
    %v238 = vrot.slane %v237, 1
    %239 = vst [vmem:[%s234] sm:$0xff] %v238
    %s240 = scalar_lea.vmem %s235, 8 [#allocation0]
    %s241 = scalar_lea.vmem %s240, 7 [#allocation0]
    %v242 = vld [vmem:[%s241] ss:$-1 sm:$0xff]
    %v243 = vrot.slane %v242, 1
    %v244 = vlaneseq
    %v245 = vshrl.u32 %v244, 7
    %vm246 = vcmp.lt.s32.totalorder %v245, 7
    %247 = vst.msk [vmem:[%s234] sm:$0xff] %vm246, %v243
    %s248 = scalar_lea.vmem [#allocation1], 88
    %s249 = scalar_lea.vmem [#allocation0], 176
    %s250 = scalar_lea.vmem %s249, 7 [#allocation0]
    %v251 = vld [vmem:[%s250] ss:$-1 sm:$0xff]
    %v252 = vrot.slane %v251, 1
    %253 = vst [vmem:[%s248] sm:$0xff] %v252
    %s254 = scalar_lea.vmem %s249, 8 [#allocation0]
    %s255 = scalar_lea.vmem %s254, 7 [#allocation0]
    %v256 = vld [vmem:[%s255] ss:$-1 sm:$0xff]
    %v257 = vrot.slane %v256, 1
    %v258 = vlaneseq
    %v259 = vshrl.u32 %v258, 7
    %vm260 = vcmp.lt.s32.totalorder %v259, 7
    %261 = vst.msk [vmem:[%s248] sm:$0xff] %vm260, %v257
    %s262 = scalar_lea.vmem [#allocation1], 96
    %s263 = scalar_lea.vmem [#allocation0], 192
    %s264 = scalar_lea.vmem %s263, 7 [#allocation0]
    %v265 = vld [vmem:[%s264] ss:$-1 sm:$0xff]
    %v266 = vrot.slane %v265, 1
    %267 = vst [vmem:[%s262] sm:$0xff] %v266
    %s268 = scalar_lea.vmem %s263, 8 [#allocation0]
    %s269 = scalar_lea.vmem %s268, 7 [#allocation0]
    %v270 = vld [vmem:[%s269] ss:$-1 sm:$0xff]
    %v271 = vrot.slane %v270, 1
    %v272 = vlaneseq
    %v273 = vshrl.u32 %v272, 7
    %vm274 = vcmp.lt.s32.totalorder %v273, 7
    %275 = vst.msk [vmem:[%s262] sm:$0xff] %vm274, %v271
    %s276 = scalar_lea.vmem [#allocation1], 104
    %s277 = scalar_lea.vmem [#allocation0], 208
    %s278 = scalar_lea.vmem %s277, 7 [#allocation0]
    %v279 = vld [vmem:[%s278] ss:$-1 sm:$0xff]
    %v280 = vrot.slane %v279, 1
    %281 = vst [vmem:[%s276] sm:$0xff] %v280
    %s282 = scalar_lea.vmem %s277, 8 [#allocation0]
    %s283 = scalar_lea.vmem %s282, 7 [#allocation0]
    %v284 = vld [vmem:[%s283] ss:$-1 sm:$0xff]
    %v285 = vrot.slane %v284, 1
    %v286 = vlaneseq
    %v287 = vshrl.u32 %v286, 7
    %vm288 = vcmp.lt.s32.totalorder %v287, 7
    %289 = vst.msk [vmem:[%s276] sm:$0xff] %vm288, %v285
    %s290 = scalar_lea.vmem [#allocation1], 112
    %s291 = scalar_lea.vmem [#allocation0], 224
    %s292 = scalar_lea.vmem %s291, 7 [#allocation0]
    %v293 = vld [vmem:[%s292] ss:$-1 sm:$0xff]
    %v294 = vrot.slane %v293, 1
    %295 = vst [vmem:[%s290] sm:$0xff] %v294
    %s296 = scalar_lea.vmem %s291, 8 [#allocation0]
    %s297 = scalar_lea.vmem %s296, 7 [#allocation0]
    %v298 = vld [vmem:[%s297] ss:$-1 sm:$0xff]
    %v299 = vrot.slane %v298, 1
    %v300 = vlaneseq
    %v301 = vshrl.u32 %v300, 7
    %vm302 = vcmp.lt.s32.totalorder %v301, 7
    %303 = vst.msk [vmem:[%s290] sm:$0xff] %vm302, %v299
    %s304 = scalar_lea.vmem [#allocation1], 120
    %s305 = scalar_lea.vmem [#allocation0], 240
    %s306 = scalar_lea.vmem %s305, 7 [#allocation0]
    %v307 = vld [vmem:[%s306] ss:$-1 sm:$0xff]
    %v308 = vrot.slane %v307, 1
    %309 = vst [vmem:[%s304] sm:$0xff] %v308
    %s310 = scalar_lea.vmem %s305, 8 [#allocation0]
    %s311 = scalar_lea.vmem %s310, 7 [#allocation0]
    %v312 = vld [vmem:[%s311] ss:$-1 sm:$0xff]
    %v313 = vrot.slane %v312, 1
    %v314 = vlaneseq
    %v315 = vshrl.u32 %v314, 7
    %vm316 = vcmp.lt.s32.totalorder %v315, 7
    %317 = vst.msk [vmem:[%s304] sm:$0xff] %vm316, %v313
    // Predicated region
    $region36: #{reverse.0} parent=1 // pred_check
      _
    $region37: #{reverse.0} parent=1 // pred_check_branch
      %319 = sbr.rel (0) target = $region39
    $region38: #{reverse.0} parent=1 // pred_region
      // Predicated region
      $region40: #{reverse.0} parent=38 // pred_check
        _
      $region41: #{reverse.0} parent=38 // pred_check_branch
        %321 = sbr.rel (0) target = $region43
      $region42: #{reverse.0} parent=38 // pred_region
        // Predicated region
        $region55: #{reverse.0} parent=42 // pred_check
          _
        $region56: #{reverse.0} parent=42 // pred_check_branch
          %367 = sbr.rel (0) target = $region58
        $region57: #{reverse.0} parent=42 // pred_region
          loop: start=0, step=1, limit=1
          $region59: #{reverse.0} parent=57 // loop_pre_header
            _
          $region60: #{reverse.0} parent=57 // loop_header
            %s369 = sphi 0, %s373
            %p370 = scmp.ge.s32.totalorder %s369, 1
            %s374 = sphi [#allocation1], [#allocation1]
            %s375 = sphi %s1, %s1
          $region61: #{reverse.0} parent=57 // loop_header_branch
            %372 = sbr.rel (%p370) target = $region65
          $region62: #{reverse.0} parent=57 // loop_body
            %v376 = vld [vmem:[%s374] sm:$0xff]
            %377 = vst [vmem:[%s375] sm:$0xff] %v376
            %v378 = vld [vmem:[%s374 + $0x8] sm:$0xff]
            %379 = vst [vmem:[%s375 + $0x8] sm:$0xff] %v378
            %v380 = vld [vmem:[%s374 + $0x10] sm:$0xff]
            %381 = vst [vmem:[%s375 + $0x10] sm:$0xff] %v380
            %v382 = vld [vmem:[%s374 + $0x18] sm:$0xff]
            %383 = vst [vmem:[%s375 + $0x18] sm:$0xff] %v382
            %v384 = vld [vmem:[%s374 + $0x20] sm:$0xff]
            %385 = vst [vmem:[%s375 + $0x20] sm:$0xff] %v384
            %v386 = vld [vmem:[%s374 + $0x28] sm:$0xff]
            %387 = vst [vmem:[%s375 + $0x28] sm:$0xff] %v386
            %v388 = vld [vmem:[%s374 + $0x30] sm:$0xff]
            %389 = vst [vmem:[%s375 + $0x30] sm:$0xff] %v388
            %v390 = vld [vmem:[%s374 + $0x38] sm:$0xff]
            %391 = vst [vmem:[%s375 + $0x38] sm:$0xff] %v390
            %v392 = vld [vmem:[%s374 + $0x40] sm:$0xff]
            %393 = vst [vmem:[%s375 + $0x40] sm:$0xff] %v392
            %v394 = vld [vmem:[%s374 + $0x48] sm:$0xff]
            %395 = vst [vmem:[%s375 + $0x48] sm:$0xff] %v394
            %v396 = vld [vmem:[%s374 + $0x50] sm:$0xff]
            %397 = vst [vmem:[%s375 + $0x50] sm:$0xff] %v396
            %v398 = vld [vmem:[%s374 + $0x58] sm:$0xff]
            %399 = vst [vmem:[%s375 + $0x58] sm:$0xff] %v398
            %v400 = vld [vmem:[%s374 + $0x60] sm:$0xff]
            %401 = vst [vmem:[%s375 + $0x60] sm:$0xff] %v400
            %v402 = vld [vmem:[%s374 + $0x68] sm:$0xff]
            %403 = vst [vmem:[%s375 + $0x68] sm:$0xff] %v402
            %v404 = vld [vmem:[%s374 + $0x70] sm:$0xff]
            %405 = vst [vmem:[%s375 + $0x70] sm:$0xff] %v404
            %v406 = vld [vmem:[%s374 + $0x78] sm:$0xff]
            %407 = vst [vmem:[%s375 + $0x78] sm:$0xff] %v406
          $region63: #{reverse.0} parent=57 // loop_footer
            %s373 = sadd.s32 1, %s369
          $region64: #{reverse.0} parent=57 // loop_footer_branch
            %368 = sbr.rel target = $region60
          $region65: #{reverse.0} parent=57 // loop_exit
            _
        $region58: #{reverse.0} parent=42 // pred_fallthru
          _
        // Predicated region
        $region66: #{reverse.0} parent=42 // pred_check
          _
        $region67: #{reverse.0} parent=42 // pred_check_branch
          %409 = sbr.rel target = $region69
        $region68: #{reverse.0} parent=42 // pred_region
          _
        $region69: #{reverse.0} parent=42 // pred_fallthru
          _
      $region43: #{reverse.0} parent=38 // pred_fallthru
        _
      // Predicated region
      $region44: #{reverse.0} parent=38 // pred_check
        _
      $region45: #{reverse.0} parent=38 // pred_check_branch
        %323 = sbr.rel target = $region47
      $region46: #{reverse.0} parent=38 // pred_region
        %s325 = ssub.s32 256, 1
        loop: start=0, step=1, limit=1
        $region48: #{reverse.0} parent=46 // loop_pre_header
          _
        $region49: #{reverse.0} parent=46 // loop_header
          %s327 = sphi 0, %s331
          %p328 = scmp.ge.s32.totalorder %s327, 1
          %s332 = sphi [#allocation1], [#allocation1]
          %s333 = sphi %s1, %s1
        $region50: #{reverse.0} parent=46 // loop_header_branch
          %330 = sbr.rel (%p328) target = $region54
        $region51: #{reverse.0} parent=46 // loop_body
          %v334 = vld [vmem:[%s332] sm:%s325]
          %335 = vst [vmem:[%s333] sm:%s325] %v334
          %v336 = vld [vmem:[%s332 + $0x8] sm:%s325]
          %337 = vst [vmem:[%s333 + $0x8] sm:%s325] %v336
          %v338 = vld [vmem:[%s332 + $0x10] sm:%s325]
          %339 = vst [vmem:[%s333 + $0x10] sm:%s325] %v338
          %v340 = vld [vmem:[%s332 + $0x18] sm:%s325]
          %341 = vst [vmem:[%s333 + $0x18] sm:%s325] %v340
          %v342 = vld [vmem:[%s332 + $0x20] sm:%s325]
          %343 = vst [vmem:[%s333 + $0x20] sm:%s325] %v342
          %v344 = vld [vmem:[%s332 + $0x28] sm:%s325]
          %345 = vst [vmem:[%s333 + $0x28] sm:%s325] %v344
          %v346 = vld [vmem:[%s332 + $0x30] sm:%s325]
          %347 = vst [vmem:[%s333 + $0x30] sm:%s325] %v346
          %v348 = vld [vmem:[%s332 + $0x38] sm:%s325]
          %349 = vst [vmem:[%s333 + $0x38] sm:%s325] %v348
          %v350 = vld [vmem:[%s332 + $0x40] sm:%s325]
          %351 = vst [vmem:[%s333 + $0x40] sm:%s325] %v350
          %v352 = vld [vmem:[%s332 + $0x48] sm:%s325]
          %353 = vst [vmem:[%s333 + $0x48] sm:%s325] %v352
          %v354 = vld [vmem:[%s332 + $0x50] sm:%s325]
          %355 = vst [vmem:[%s333 + $0x50] sm:%s325] %v354
          %v356 = vld [vmem:[%s332 + $0x58] sm:%s325]
          %357 = vst [vmem:[%s333 + $0x58] sm:%s325] %v356
          %v358 = vld [vmem:[%s332 + $0x60] sm:%s325]
          %359 = vst [vmem:[%s333 + $0x60] sm:%s325] %v358
          %v360 = vld [vmem:[%s332 + $0x68] sm:%s325]
          %361 = vst [vmem:[%s333 + $0x68] sm:%s325] %v360
          %v362 = vld [vmem:[%s332 + $0x70] sm:%s325]
          %363 = vst [vmem:[%s333 + $0x70] sm:%s325] %v362
          %v364 = vld [vmem:[%s332 + $0x78] sm:%s325]
          %365 = vst [vmem:[%s333 + $0x78] sm:%s325] %v364
        $region52: #{reverse.0} parent=46 // loop_footer
          %s331 = sadd.s32 1, %s327
        $region53: #{reverse.0} parent=46 // loop_footer_branch
          %326 = sbr.rel target = $region49
        $region54: #{reverse.0} parent=46 // loop_exit
          _
      $region47: #{reverse.0} parent=38 // pred_fallthru
        _
    $region39: #{reverse.0} parent=1 // pred_fallthru
      _
    %410 = vnop

// kernel: token_mixer_forward.4
$region0: #{token_mixer_forward.4}
  #allocation0 [shape = 'u32[]', space=smem, size = 0x4, offset = 0x4, fixed_abs, tag = 'smem constant byte address 0x4 - core index']
  #allocation1 [shape = 'u32[72,128]{1,0:T(1,128)}', space=vmem, size = 0x9000, scoped, tag = 'internal scratch']
  %s0 = inlined_call_operand.vmem [shape: f32[2,16,256], index: 0, kind: input, shape index: {}]
  %s1 = inlined_call_operand.vmem [shape: f32[4,256], index: 1, kind: input, shape index: {}]
  %s2 = inlined_call_operand.vmem [shape: f32[16,1], index: 2, kind: input, shape index: {}]
  %s3 = inlined_call_operand.vmem [shape: f32[16,1], index: 3, kind: input, shape index: {}]
  %s4 = inlined_call_operand.vmem [shape: f32[16,9], index: 4, kind: input, shape index: {}]
  %s5 = inlined_call_operand.vmem [shape: f32[16,1], index: 5, kind: input, shape index: {}]
  %s6 = inlined_call_operand.vmem [shape: f32[4,16], index: 6, kind: input, shape index: {}]
  %s7 = inlined_call_operand.vmem [shape: f32[4,1], index: 7, kind: input, shape index: {}]
  %s8 = inlined_call_operand.vmem [shape: f32[16,4], index: 8, kind: input, shape index: {}]
  %s9 = inlined_call_operand.vmem [shape: f32[16,16], index: 9, kind: input, shape index: {}]
  %s10 = inlined_call_operand.vmem [shape: f32[16,4], index: 10, kind: input, shape index: {}]
  %s11 = inlined_call_operand.vmem [shape: f32[2,16,256], index: 11, kind: output, shape index: {}]
  %s12 = sld [smem:[#allocation0]]
  $region77: #{token_mixer_forward.4} parent=0
    _
  %s14 = ssub.s32 1, %s12
  %s15 = scalar_select 0, %s14, %s12
  loop: start=0, step=1, limit=4
  $region2: #{token_mixer_forward.4} parent=0 // loop_pre_header
    _
  $region3: #{token_mixer_forward.4} parent=0 // loop_header
    %s17 = sphi 0, %s21
    %p18 = scmp.ge.s32.totalorder %s17, 4
    %s27 = sphi 0, %s29
    %s30 = sphi 0, %s27
    %s31 = sphi 0, %s30
    %s47 = sphi 0, %s31
    %s51 = sphi 0, %s51
    %s53 = sphi 0, %s51
    %s54 = sphi 0, %s53
    %s68 = sphi 0, %s54
    %s72 = sphi 0, %s72
    %s74 = sphi 0, %s72
    %s75 = sphi 0, %s74
    %s89 = sphi 0, %s75
    %s93 = sphi 0, %s93
    %s95 = sphi 0, %s93
    %s96 = sphi 0, %s95
    %s110 = sphi 0, %s96
    %s114 = sphi 0, %s114
    %s116 = sphi 0, %s114
    %s117 = sphi 0, %s116
    %s131 = sphi 0, %s117
    %s135 = sphi 0, %s135
    %s137 = sphi 0, %s135
    %s138 = sphi 0, %s137
    %s152 = sphi 0, %s138
    %s156 = sphi 0, %s156
    %s158 = sphi 0, %s156
    %s159 = sphi 0, %s158
    %s173 = sphi 0, %s159
    %s177 = sphi 0, %s177
    %s179 = sphi 0, %s177
    %s180 = sphi 0, %s179
    %s194 = sphi 0, %s180
    %s198 = sphi 0, %s198
    %s200 = sphi 0, %s198
    %s201 = sphi 0, %s200
    %s215 = sphi 0, %s201
    %s219 = sphi 0, %s219
    %s221 = sphi 0, %s219
    %s222 = sphi 0, %s221
    %s236 = sphi 0, %s222
    %s240 = sphi 0, %s240
    %s242 = sphi 0, %s240
    %s243 = sphi 0, %s242
    %s257 = sphi 0, %s243
    %s263 = sphi 0, %s265
    %s266 = sphi 0, %s263
    %s267 = sphi 0, %s266
    %s283 = sphi 0, %s267
  $region4: #{token_mixer_forward.4} parent=0 // loop_header_branch
    %20 = sbr.rel (%p18) target = $region8
  $region5: #{token_mixer_forward.4} parent=0 // loop_body
    %s22 = ssub.s32 %s17, 1
    %s23 = ssub.s32 %s17, 2
    %s24 = sadd.s32 %s17, 1
    %s25 = ssub.s32 %s17, %s24
    %p26 = scmp.eq.s32.totalorder %s25, 0
    %s28 = sadd.s32 %s27, 1
    %s29 = scalar_select %p26, %s27, %s28
    %p32 = pneg %p26
    %p33 = scmp.eq.s32.totalorder %s17, 1
    %p34 = por %p32, %p33
    %p35 = scmp.ne.s32.totalorder %s27, %s30
    %p36 = scmp.eq.s32.totalorder %s17, 0
    %p37 = por %p35, %p36
    %p38 = scmp.ne.s32.totalorder %s27, %s30
    %p39 = scmp.eq.s32.totalorder %s22, 1
    %p40 = por %p38, %p39
    %p41 = scmp.ne.s32.totalorder %s30, %s31
    %p42 = scmp.eq.s32.totalorder %s22, 0
    %p43 = por %p41, %p42
    %p44 = scmp.ne.s32.totalorder %s30, %s31
    %p45 = scmp.eq.s32.totalorder %s23, 1
    %p46 = por %p44, %p45
    %p48 = scmp.ne.s32.totalorder %s31, %s47
    %p49 = scmp.eq.s32.totalorder %s23, 0
    %p50 = por %p48, %p49
    %s52 = sadd.s32 %s51, 1
    %p55 = scmp.eq.s32.totalorder %s17, 1
    %p56 = scmp.ne.s32.totalorder %s51, %s53
    %p57 = scmp.eq.s32.totalorder %s17, 0
    %p58 = por %p56, %p57
    %p59 = scmp.ne.s32.totalorder %s51, %s53
    %p60 = scmp.eq.s32.totalorder %s22, 1
    %p61 = por %p59, %p60
    %p62 = scmp.ne.s32.totalorder %s53, %s54
    %p63 = scmp.eq.s32.totalorder %s22, 0
    %p64 = por %p62, %p63
    %p65 = scmp.ne.s32.totalorder %s53, %s54
    %p66 = scmp.eq.s32.totalorder %s23, 1
    %p67 = por %p65, %p66
    %p69 = scmp.ne.s32.totalorder %s54, %s68
    %p70 = scmp.eq.s32.totalorder %s23, 0
    %p71 = por %p69, %p70
    %s73 = sadd.s32 %s72, 1
    %p76 = scmp.eq.s32.totalorder %s17, 1
    %p77 = scmp.ne.s32.totalorder %s72, %s74
    %p78 = scmp.eq.s32.totalorder %s17, 0
    %p79 = por %p77, %p78
    %p80 = scmp.ne.s32.totalorder %s72, %s74
    %p81 = scmp.eq.s32.totalorder %s22, 1
    %p82 = por %p80, %p81
    %p83 = scmp.ne.s32.totalorder %s74, %s75
    %p84 = scmp.eq.s32.totalorder %s22, 0
    %p85 = por %p83, %p84
    %p86 = scmp.ne.s32.totalorder %s74, %s75
    %p87 = scmp.eq.s32.totalorder %s23, 1
    %p88 = por %p86, %p87
    %p90 = scmp.ne.s32.totalorder %s75, %s89
    %p91 = scmp.eq.s32.totalorder %s23, 0
    %p92 = por %p90, %p91
    %s94 = sadd.s32 %s93, 1
    %p97 = scmp.eq.s32.totalorder %s17, 1
    %p98 = scmp.ne.s32.totalorder %s93, %s95
    %p99 = scmp.eq.s32.totalorder %s17, 0
    %p100 = por %p98, %p99
    %p101 = scmp.ne.s32.totalorder %s93, %s95
    %p102 = scmp.eq.s32.totalorder %s22, 1
    %p103 = por %p101, %p102
    %p104 = scmp.ne.s32.totalorder %s95, %s96
    %p105 = scmp.eq.s32.totalorder %s22, 0
    %p106 = por %p104, %p105
    %p107 = scmp.ne.s32.totalorder %s95, %s96
    %p108 = scmp.eq.s32.totalorder %s23, 1
    %p109 = por %p107, %p108
    %p111 = scmp.ne.s32.totalorder %s96, %s110
    %p112 = scmp.eq.s32.totalorder %s23, 0
    %p113 = por %p111, %p112
    %s115 = sadd.s32 %s114, 1
    %p118 = scmp.eq.s32.totalorder %s17, 1
    %p119 = scmp.ne.s32.totalorder %s114, %s116
    %p120 = scmp.eq.s32.totalorder %s17, 0
    %p121 = por %p119, %p120
    %p122 = scmp.ne.s32.totalorder %s114, %s116
    %p123 = scmp.eq.s32.totalorder %s22, 1
    %p124 = por %p122, %p123
    %p125 = scmp.ne.s32.totalorder %s116, %s117
    %p126 = scmp.eq.s32.totalorder %s22, 0
    %p127 = por %p125, %p126
    %p128 = scmp.ne.s32.totalorder %s116, %s117
    %p129 = scmp.eq.s32.totalorder %s23, 1
    %p130 = por %p128, %p129
    %p132 = scmp.ne.s32.totalorder %s117, %s131
    %p133 = scmp.eq.s32.totalorder %s23, 0
    %p134 = por %p132, %p133
    %s136 = sadd.s32 %s135, 1
    %p139 = scmp.eq.s32.totalorder %s17, 1
    %p140 = scmp.ne.s32.totalorder %s135, %s137
    %p141 = scmp.eq.s32.totalorder %s17, 0
    %p142 = por %p140, %p141
    %p143 = scmp.ne.s32.totalorder %s135, %s137
    %p144 = scmp.eq.s32.totalorder %s22, 1
    %p145 = por %p143, %p144
    %p146 = scmp.ne.s32.totalorder %s137, %s138
    %p147 = scmp.eq.s32.totalorder %s22, 0
    %p148 = por %p146, %p147
    %p149 = scmp.ne.s32.totalorder %s137, %s138
    %p150 = scmp.eq.s32.totalorder %s23, 1
    %p151 = por %p149, %p150
    %p153 = scmp.ne.s32.totalorder %s138, %s152
    %p154 = scmp.eq.s32.totalorder %s23, 0
    %p155 = por %p153, %p154
    %s157 = sadd.s32 %s156, 1
    %p160 = scmp.eq.s32.totalorder %s17, 1
    %p161 = scmp.ne.s32.totalorder %s156, %s158
    %p162 = scmp.eq.s32.totalorder %s17, 0
    %p163 = por %p161, %p162
    %p164 = scmp.ne.s32.totalorder %s156, %s158
    %p165 = scmp.eq.s32.totalorder %s22, 1
    %p166 = por %p164, %p165
    %p167 = scmp.ne.s32.totalorder %s158, %s159
    %p168 = scmp.eq.s32.totalorder %s22, 0
    %p169 = por %p167, %p168
    %p170 = scmp.ne.s32.totalorder %s158, %s159
    %p171 = scmp.eq.s32.totalorder %s23, 1
    %p172 = por %p170, %p171
    %p174 = scmp.ne.s32.totalorder %s159, %s173
    %p175 = scmp.eq.s32.totalorder %s23, 0
    %p176 = por %p174, %p175
    %s178 = sadd.s32 %s177, 1
    %p181 = scmp.eq.s32.totalorder %s17, 1
    %p182 = scmp.ne.s32.totalorder %s177, %s179
    %p183 = scmp.eq.s32.totalorder %s17, 0
    %p184 = por %p182, %p183
    %p185 = scmp.ne.s32.totalorder %s177, %s179
    %p186 = scmp.eq.s32.totalorder %s22, 1
    %p187 = por %p185, %p186
    %p188 = scmp.ne.s32.totalorder %s179, %s180
    %p189 = scmp.eq.s32.totalorder %s22, 0
    %p190 = por %p188, %p189
    %p191 = scmp.ne.s32.totalorder %s179, %s180
    %p192 = scmp.eq.s32.totalorder %s23, 1
    %p193 = por %p191, %p192
    %p195 = scmp.ne.s32.totalorder %s180, %s194
    %p196 = scmp.eq.s32.totalorder %s23, 0
    %p197 = por %p195, %p196
    %s199 = sadd.s32 %s198, 1
    %p202 = scmp.eq.s32.totalorder %s17, 1
    %p203 = scmp.ne.s32.totalorder %s198, %s200
    %p204 = scmp.eq.s32.totalorder %s17, 0
    %p205 = por %p203, %p204
    %p206 = scmp.ne.s32.totalorder %s198, %s200
    %p207 = scmp.eq.s32.totalorder %s22, 1
    %p208 = por %p206, %p207
    %p209 = scmp.ne.s32.totalorder %s200, %s201
    %p210 = scmp.eq.s32.totalorder %s22, 0
    %p211 = por %p209, %p210
    %p212 = scmp.ne.s32.totalorder %s200, %s201
    %p213 = scmp.eq.s32.totalorder %s23, 1
    %p214 = por %p212, %p213
    %p216 = scmp.ne.s32.totalorder %s201, %s215
    %p217 = scmp.eq.s32.totalorder %s23, 0
    %p218 = por %p216, %p217
    %s220 = sadd.s32 %s219, 1
    %p223 = scmp.eq.s32.totalorder %s17, 1
    %p224 = scmp.ne.s32.totalorder %s219, %s221
    %p225 = scmp.eq.s32.totalorder %s17, 0
    %p226 = por %p224, %p225
    %p227 = scmp.ne.s32.totalorder %s219, %s221
    %p228 = scmp.eq.s32.totalorder %s22, 1
    %p229 = por %p227, %p228
    %p230 = scmp.ne.s32.totalorder %s221, %s222
    %p231 = scmp.eq.s32.totalorder %s22, 0
    %p232 = por %p230, %p231
    %p233 = scmp.ne.s32.totalorder %s221, %s222
    %p234 = scmp.eq.s32.totalorder %s23, 1
    %p235 = por %p233, %p234
    %p237 = scmp.ne.s32.totalorder %s222, %s236
    %p238 = scmp.eq.s32.totalorder %s23, 0
    %p239 = por %p237, %p238
    %s241 = sadd.s32 %s240, 1
    %p244 = scmp.eq.s32.totalorder %s17, 1
    %p245 = scmp.ne.s32.totalorder %s240, %s242
    %p246 = scmp.eq.s32.totalorder %s17, 0
    %p247 = por %p245, %p246
    %p248 = scmp.ne.s32.totalorder %s240, %s242
    %p249 = scmp.eq.s32.totalorder %s22, 1
    %p250 = por %p248, %p249
    %p251 = scmp.ne.s32.totalorder %s242, %s243
    %p252 = scmp.eq.s32.totalorder %s22, 0
    %p253 = por %p251, %p252
    %p254 = scmp.ne.s32.totalorder %s242, %s243
    %p255 = scmp.eq.s32.totalorder %s23, 1
    %p256 = por %p254, %p255
    %p258 = scmp.ne.s32.totalorder %s243, %s257
    %p259 = scmp.eq.s32.totalorder %s23, 0
    %p260 = por %p258, %p259
    %s261 = ssub.s32 %s17, %s24
    %p262 = scmp.eq.s32.totalorder %s261, 0
    %s264 = sadd.s32 %s263, 1
    %s265 = scalar_select %p262, %s263, %s264
    %p268 = pneg %p262
    %p269 = scmp.eq.s32.totalorder %s17, 1
    %p270 = por %p268, %p269
    %p271 = scmp.ne.s32.totalorder %s263, %s266
    %p272 = scmp.eq.s32.totalorder %s17, 0
    %p273 = por %p271, %p272
    %p274 = scmp.ne.s32.totalorder %s263, %s266
    %p275 = scmp.eq.s32.totalorder %s22, 1
    %p276 = por %p274, %p275
    %p277 = scmp.ne.s32.totalorder %s266, %s267
    %p278 = scmp.eq.s32.totalorder %s22, 0
    %p279 = por %p277, %p278
    %p280 = scmp.ne.s32.totalorder %s266, %s267
    %p281 = scmp.eq.s32.totalorder %s23, 1
    %p282 = por %p280, %p281
    %p284 = scmp.ne.s32.totalorder %s267, %s283
    %p285 = scmp.eq.s32.totalorder %s23, 0
    %p286 = por %p284, %p285
    %p287 = scmp.le.s32.totalorder 1, %s17
    %p288 = scmp.lt.s32.totalorder %s17, 3
    %p289 = pnand %p287, %p288
    %p290 = pneg %p289
    // Predicated region
    $region9: #{token_mixer_forward.4} parent=5 // pred_check
      _
    $region10: #{token_mixer_forward.4} parent=5 // pred_check_branch
      %292 = sbr.rel (%p289) target = $region12
    $region11: #{token_mixer_forward.4} parent=5 // pred_region
      %s293 = ssub.s32 %s17, 1
      // Predicated region
      $region13: #{token_mixer_forward.4} parent=11 // pred_check
        %p294 = pneg %p64
      $region14: #{token_mixer_forward.4} parent=11 // pred_check_branch
        %296 = sbr.rel (%p294) target = $region16
      $region15: #{token_mixer_forward.4} parent=11 // pred_region
        _
      $region16: #{token_mixer_forward.4} parent=11 // pred_fallthru
        _
      // Predicated region
      $region17: #{token_mixer_forward.4} parent=11 // pred_check
        %p297 = pneg %p85
      $region18: #{token_mixer_forward.4} parent=11 // pred_check_branch
        %299 = sbr.rel (%p297) target = $region20
      $region19: #{token_mixer_forward.4} parent=11 // pred_region
        _
      $region20: #{token_mixer_forward.4} parent=11 // pred_fallthru
        _
      // Predicated region
      $region21: #{token_mixer_forward.4} parent=11 // pred_check
        %p300 = pneg %p106
      $region22: #{token_mixer_forward.4} parent=11 // pred_check_branch
        %302 = sbr.rel (%p300) target = $region24
      $region23: #{token_mixer_forward.4} parent=11 // pred_region
        _
      $region24: #{token_mixer_forward.4} parent=11 // pred_fallthru
        _
      // Predicated region
      $region25: #{token_mixer_forward.4} parent=11 // pred_check
        %p303 = pneg %p127
      $region26: #{token_mixer_forward.4} parent=11 // pred_check_branch
        %305 = sbr.rel (%p303) target = $region28
      $region27: #{token_mixer_forward.4} parent=11 // pred_region
        _
      $region28: #{token_mixer_forward.4} parent=11 // pred_fallthru
        _
      // Predicated region
      $region29: #{token_mixer_forward.4} parent=11 // pred_check
        %p306 = pneg %p148
      $region30: #{token_mixer_forward.4} parent=11 // pred_check_branch
        %308 = sbr.rel (%p306) target = $region32
      $region31: #{token_mixer_forward.4} parent=11 // pred_region
        _
      $region32: #{token_mixer_forward.4} parent=11 // pred_fallthru
        _
      // Predicated region
      $region33: #{token_mixer_forward.4} parent=11 // pred_check
        %p309 = pneg %p169
      $region34: #{token_mixer_forward.4} parent=11 // pred_check_branch
        %311 = sbr.rel (%p309) target = $region36
      $region35: #{token_mixer_forward.4} parent=11 // pred_region
        _
      $region36: #{token_mixer_forward.4} parent=11 // pred_fallthru
        _
      // Predicated region
      $region37: #{token_mixer_forward.4} parent=11 // pred_check
        %p312 = pneg %p190
      $region38: #{token_mixer_forward.4} parent=11 // pred_check_branch
        %314 = sbr.rel (%p312) target = $region40
      $region39: #{token_mixer_forward.4} parent=11 // pred_region
        _
      $region40: #{token_mixer_forward.4} parent=11 // pred_fallthru
        _
      // Predicated region
      $region41: #{token_mixer_forward.4} parent=11 // pred_check
        %p315 = pneg %p211
      $region42: #{token_mixer_forward.4} parent=11 // pred_check_branch
        %317 = sbr.rel (%p315) target = $region44
      $region43: #{token_mixer_forward.4} parent=11 // pred_region
        _
      $region44: #{token_mixer_forward.4} parent=11 // pred_fallthru
        _
      // Predicated region
      $region45: #{token_mixer_forward.4} parent=11 // pred_check
        %p318 = pneg %p232
      $region46: #{token_mixer_forward.4} parent=11 // pred_check_branch
        %320 = sbr.rel (%p318) target = $region48
      $region47: #{token_mixer_forward.4} parent=11 // pred_region
        _
      $region48: #{token_mixer_forward.4} parent=11 // pred_fallthru
        _
      // Predicated region
      $region49: #{token_mixer_forward.4} parent=11 // pred_check
        %p321 = pneg %p253
      $region50: #{token_mixer_forward.4} parent=11 // pred_check_branch
        %323 = sbr.rel (%p321) target = $region52
      $region51: #{token_mixer_forward.4} parent=11 // pred_region
        _
      $region52: #{token_mixer_forward.4} parent=11 // pred_fallthru
        _
    $region12: #{token_mixer_forward.4} parent=5 // pred_fallthru
      _
    %p324 = scmp.lt.s32.totalorder %s17, 2
    // Predicated region
    $region53: #{token_mixer_forward.4} parent=5 // pred_check
      %p325 = pneg %p324
    $region54: #{token_mixer_forward.4} parent=5 // pred_check_branch
      %327 = sbr.rel (%p325) target = $region56
    $region55: #{token_mixer_forward.4} parent=5 // pred_region
      // Predicated region
      $region57: #{token_mixer_forward.4} parent=55 // pred_check
        %p328 = pneg %p37
      $region58: #{token_mixer_forward.4} parent=55 // pred_check_branch
        %330 = sbr.rel (%p328) target = $region60
      $region59: #{token_mixer_forward.4} parent=55 // pred_region
        %p331 = scmp.lt.s32.totalorder %s17, 1
        %s332 = scalar_select %p331, %s17, 1
        %s333 = smul.addr %s332, 4
        %s334 = smul.addr %s333, 8
        %s335 = scalar_lea.vmem %s0, %s334
      $region60: #{token_mixer_forward.4} parent=55 // pred_fallthru
        _
    $region56: #{token_mixer_forward.4} parent=5 // pred_fallthru
      _
    %p336 = scmp.le.s32.totalorder 1, %s17
    %p337 = scmp.lt.s32.totalorder %s17, 3
    %p338 = pnand %p336, %p337
    %p339 = pneg %p338
    // Predicated region
    $region61: #{token_mixer_forward.4} parent=5 // pred_check
      _
    $region62: #{token_mixer_forward.4} parent=5 // pred_check_branch
      %341 = sbr.rel (%p338) target = $region64
    $region63: #{token_mixer_forward.4} parent=5 // pred_region
      %s342 = ssub.s32 %s17, 1
      %p343 = scmp.lt.s32.totalorder %s22, 1
      %s344 = scalar_select %p343, %s22, 1
      %s345 = smul.addr %s344, 4
      %s346 = smul.addr %s345, 8
      %s347 = scalar_lea.vmem %s0, %s346
      %p348 = pneg %p43
      %p349 = pneg %p40
      %p350 = pneg %p64
      %p351 = pneg %p61
      %p352 = pneg %p85
      %p353 = pneg %p82
      %p354 = pneg %p106
      %p355 = pneg %p103
      %p356 = pneg %p127
      %p357 = pneg %p124
      %p358 = pneg %p148
      %p359 = pneg %p145
      %p360 = pneg %p169
      %p361 = pneg %p166
      %p362 = pneg %p190
      %p363 = pneg %p187
      %p364 = pneg %p211
      %p365 = pneg %p208
      %p366 = pneg %p232
      %p367 = pneg %p229
      %p368 = pneg %p253
      %p369 = pneg %p250
      %p370 = pneg %p279
      %p371 = pneg %p276
      %p372 = scmp.lt.s32.totalorder %s22, 1
      %s373 = scalar_select %p372, %s22, 1
      %s374 = smul.addr %s373, 4
      %s375 = smul.addr %s374, 8
      %s376 = scalar_lea.vmem %s11, %s375
      %p377 = scmp.lt.s32.totalorder %s22, 1
      %s378 = scalar_select %p377, %s22, 1
      %s379 = smul.addr %s378, 4
      %s380 = smul.addr %s379, 8
      %s381 = scalar_lea.vmem %s0, %s380
      %p382 = scmp.lt.s32.totalorder %s22, 1
      %s383 = scalar_select %p382, %s22, 1
      %s384 = smul.addr %s383, 4
      %s385 = smul.addr %s384, 8
      %s386 = scalar_lea.vmem %s11, %s385
      %v388 = vld [vmem:[%s381] sm:$0xff]
      %v389 = vld [vmem:[%s381 + $0x8] sm:$0xff]
      %v390 = vld [vmem:[%s381 + $0x10] sm:$0xff]
      %v391 = vld [vmem:[%s381 + $0x18] sm:$0xff]
      %v392 = vld [vmem:[%s2] sm:$0xff]
      %v393 = vld [vmem:[%s2 + $0x8] sm:$0xff]
      %395 = vset.pattern.permute.xlu0 0
      %396 = vperm.xlu0 %395, %v392
      %v397 = vpop.permute.xlu0 %396
      %400 = vset.pattern.permute.xlu0 0
      %401 = vperm.xlu0 %400, %v393
      %v402 = vpop.permute.xlu0 %401
      %v404 = vmul.f32 %v388, %v397
      %v405 = vmul.f32 %v389, %v397
      %v406 = vmul.f32 %v390, %v402
      %v407 = vmul.f32 %v391, %v402
      %v408 = vld [vmem:[%s3] sm:$0xff]
      %v409 = vld [vmem:[%s3 + $0x8] sm:$0xff]
      %411 = vset.pattern.permute.xlu0 0
      %412 = vperm.xlu0 %411, %v408
      %v413 = vpop.permute.xlu0 %412
      %416 = vset.pattern.permute.xlu0 0
      %417 = vperm.xlu0 %416, %v409
      %v418 = vpop.permute.xlu0 %417
      %v420 = vadd.f32 %v404, %v413
      %v421 = vadd.f32 %v405, %v413
      %v422 = vadd.f32 %v406, %v418
      %v423 = vadd.f32 %v407, %v418
      %v424 = vld [vmem:[%s1] ss:$4 sm:$0x3]
      %s425 = scalar_lea.vmem %s1, 1
      %v426 = vld [vmem:[%s425] ss:$4 sm:$0x3]
      %s427 = scalar_lea.vmem %s1, 2
      %v428 = vld [vmem:[%s427] ss:$4 sm:$0x3]
      %s429 = scalar_lea.vmem %s1, 3
      %v430 = vld [vmem:[%s429] ss:$4 sm:$0x3]
      %431 = vrot.lane.b32.xlu0 %v420, 9
      %v432 = vpop.permute.xlu0 %431
      %433 = vrot.lane.b32.xlu0 %v422, 9
      %v434 = vpop.permute.xlu0 %433
      %435 = vrot.lane.b32.xlu0 %v421, 9
      %v436 = vpop.permute.xlu0 %435
      %437 = vrot.lane.b32.xlu0 %v423, 9
      %v438 = vpop.permute.xlu0 %437
      %v439 = vlaneseq
      %v440 = vand.u32 %v439, 127
      %vm441 = vcmp.lt.s32.totalorder %v440, 9
      %v442 = vsel %vm441, %v432, %v436
      %v443 = vsel %vm441, %v434, %v438
      %v444 = vsel %vm441, %v436, %v432
      %v445 = vsel %vm441, %v438, %v434
      %v447 = vperm.slane %v424, 0
      %v448 = vperm.slane %v424, 1
      %v451 = vmul.f32 %v444, %v447
      %v452 = vmul.f32 %v442, %v448
      %v453 = vmul.f32 %v445, %v447
      %v454 = vmul.f32 %v443, %v448
      %455 = vrot.lane.b32.xlu0 %v420, 119
      %v456 = vpop.permute.xlu0 %455
      %457 = vrot.lane.b32.xlu0 %v422, 119
      %v458 = vpop.permute.xlu0 %457
      %459 = vrot.lane.b32.xlu0 %v421, 119
      %v460 = vpop.permute.xlu0 %459
      %461 = vrot.lane.b32.xlu0 %v423, 119
      %v462 = vpop.permute.xlu0 %461
      %vm463 = vcmp.lt.s32.totalorder %v440, 119
      %v464 = vsel %vm463, %v456, %v460
      %v465 = vsel %vm463, %v458, %v462
      %v466 = vsel %vm463, %v460, %v456
      %v467 = vsel %vm463, %v462, %v458
      %v469 = vperm.slane %v426, 0
      %v470 = vperm.slane %v426, 1
      %v473 = vmul.f32 %v464, %v469
      %v474 = vmul.f32 %v466, %v470
      %v475 = vmul.f32 %v465, %v469
      %v476 = vmul.f32 %v467, %v470
      %v477 = vld [vmem:[%s4] sm:$0xff]
      %v478 = vld [vmem:[%s4 + $0x8] sm:$0xff]
      %480 = vset.pattern.permute.xlu0 1
      %481 = vperm.xlu0 %480, %v477
      %v482 = vpop.permute.xlu0 %481
      %485 = vset.pattern.permute.xlu0 1
      %486 = vperm.xlu0 %485, %v478
      %v487 = vpop.permute.xlu0 %486
      %v489 = vmul.f32 %v482, %v451
      %v490 = vmul.f32 %v482, %v452
      %v491 = vmul.f32 %v487, %v453
      %v492 = vmul.f32 %v487, %v454
      %493 = vset.pattern.permute.xlu0 4
      %494 = vperm.xlu0 %493, %v477
      %v495 = vpop.permute.xlu0 %494
      %497 = vset.pattern.permute.xlu0 4
      %498 = vperm.xlu0 %497, %v478
      %v499 = vpop.permute.xlu0 %498
      %v501 = vmul.f32 %v495, %v420
      %v502 = vmul.f32 %v495, %v421
      %v503 = vmul.f32 %v499, %v422
      %v504 = vmul.f32 %v499, %v423
      %v505 = vadd.f32 %v489, %v501
      %v506 = vadd.f32 %v490, %v502
      %v507 = vadd.f32 %v491, %v503
      %v508 = vadd.f32 %v492, %v504
      %509 = vset.pattern.permute.xlu0 7
      %510 = vperm.xlu0 %509, %v477
      %v511 = vpop.permute.xlu0 %510
      %513 = vset.pattern.permute.xlu0 7
      %514 = vperm.xlu0 %513, %v478
      %v515 = vpop.permute.xlu0 %514
      %v517 = vmul.f32 %v511, %v473
      %v518 = vmul.f32 %v511, %v474
      %v519 = vmul.f32 %v515, %v475
      %v520 = vmul.f32 %v515, %v476
      %v521 = vadd.f32 %v505, %v517
      %v522 = vadd.f32 %v506, %v518
      %v523 = vadd.f32 %v507, %v519
      %v524 = vadd.f32 %v508, %v520
      %v525 = vld [vmem:[%s5] sm:$0xff]
      %v526 = vld [vmem:[%s5 + $0x8] sm:$0xff]
      %528 = vset.pattern.permute.xlu0 0
      %529 = vperm.xlu0 %528, %v525
      %v530 = vpop.permute.xlu0 %529
      %533 = vset.pattern.permute.xlu0 0
      %534 = vperm.xlu0 %533, %v526
      %v535 = vpop.permute.xlu0 %534
      %v537 = vadd.f32 %v521, %v530
      %v538 = vadd.f32 %v522, %v530
      %v539 = vadd.f32 %v523, %v535
      %v540 = vadd.f32 %v524, %v535
      %v541 = vadd.f32 %v537, %v420
      %v542 = vadd.f32 %v538, %v421
      %v543 = vadd.f32 %v539, %v422
      %v544 = vadd.f32 %v540, %v423
      %545 = vset.pattern.permute.xlu0 0
      %546 = vperm.xlu0 %545, %v477
      %v547 = vpop.permute.xlu0 %546
      %549 = vset.pattern.permute.xlu0 0
      %550 = vperm.xlu0 %549, %v478
      %v551 = vpop.permute.xlu0 %550
      %v553 = vmul.f32 %v547, %v451
      %v554 = vmul.f32 %v547, %v452
      %v555 = vmul.f32 %v551, %v453
      %v556 = vmul.f32 %v551, %v454
      %557 = vset.pattern.permute.xlu0 3
      %558 = vperm.xlu0 %557, %v477
      %v559 = vpop.permute.xlu0 %558
      %561 = vset.pattern.permute.xlu0 3
      %562 = vperm.xlu0 %561, %v478
      %v563 = vpop.permute.xlu0 %562
      %v565 = vmul.f32 %v559, %v420
      %v566 = vmul.f32 %v559, %v421
      %v567 = vmul.f32 %v563, %v422
      %v568 = vmul.f32 %v563, %v423
      %v569 = vadd.f32 %v553, %v565
      %v570 = vadd.f32 %v554, %v566
      %v571 = vadd.f32 %v555, %v567
      %v572 = vadd.f32 %v556, %v568
      %573 = vset.pattern.permute.xlu0 6
      %574 = vperm.xlu0 %573, %v477
      %v575 = vpop.permute.xlu0 %574
      %577 = vset.pattern.permute.xlu0 6
      %578 = vperm.xlu0 %577, %v478
      %v579 = vpop.permute.xlu0 %578
      %v581 = vmul.f32 %v575, %v473
      %v582 = vmul.f32 %v575, %v474
      %v583 = vmul.f32 %v579, %v475
      %v584 = vmul.f32 %v579, %v476
      %v585 = vadd.f32 %v569, %v581
      %v586 = vadd.f32 %v570, %v582
      %v587 = vadd.f32 %v571, %v583
      %v588 = vadd.f32 %v572, %v584
      %589 = vset.pattern.permute.xlu0 2
      %590 = vperm.xlu0 %589, %v477
      %v591 = vpop.permute.xlu0 %590
      %593 = vset.pattern.permute.xlu0 2
      %594 = vperm.xlu0 %593, %v478
      %v595 = vpop.permute.xlu0 %594
      %v597 = vmul.f32 %v591, %v451
      %v598 = vmul.f32 %v591, %v452
      %v599 = vmul.f32 %v595, %v453
      %v600 = vmul.f32 %v595, %v454
      %601 = vset.pattern.permute.xlu0 5
      %602 = vperm.xlu0 %601, %v477
      %v603 = vpop.permute.xlu0 %602
      %605 = vset.pattern.permute.xlu0 5
      %606 = vperm.xlu0 %605, %v478
      %v607 = vpop.permute.xlu0 %606
      %v609 = vmul.f32 %v603, %v420
      %v610 = vmul.f32 %v603, %v421
      %v611 = vmul.f32 %v607, %v422
      %v612 = vmul.f32 %v607, %v423
      %v613 = vadd.f32 %v597, %v609
      %v614 = vadd.f32 %v598, %v610
      %v615 = vadd.f32 %v599, %v611
      %v616 = vadd.f32 %v600, %v612
      %617 = vset.pattern.permute.xlu0 8
      %618 = vperm.xlu0 %617, %v477
      %v619 = vpop.permute.xlu0 %618
      %621 = vset.pattern.permute.xlu0 8
      %622 = vperm.xlu0 %621, %v478
      %v623 = vpop.permute.xlu0 %622
      %v625 = vmul.f32 %v619, %v473
      %v626 = vmul.f32 %v619, %v474
      %v627 = vmul.f32 %v623, %v475
      %v628 = vmul.f32 %v623, %v476
      %v629 = vadd.f32 %v613, %v625
      %v630 = vadd.f32 %v614, %v626
      %v631 = vadd.f32 %v615, %v627
      %v632 = vadd.f32 %v616, %v628
      %633 = vrot.lane.b32.xlu0 %v585, 1
      %v634 = vpop.permute.xlu0 %633
      %635 = vrot.lane.b32.xlu0 %v587, 1
      %v636 = vpop.permute.xlu0 %635
      %637 = vrot.lane.b32.xlu0 %v586, 1
      %v638 = vpop.permute.xlu0 %637
      %639 = vrot.lane.b32.xlu0 %v588, 1
      %v640 = vpop.permute.xlu0 %639
      %vm641 = vcmp.lt.s32.totalorder %v440, 1
      %v642 = vsel %vm641, %v634, %v638
      %v643 = vsel %vm641, %v636, %v640
      %v644 = vsel %vm641, %v638, %v634
      %v645 = vsel %vm641, %v640, %v636
      %v647 = vperm.slane %v428, 0
      %v648 = vperm.slane %v428, 1
      %v651 = vmul.f32 %v644, %v647
      %v652 = vmul.f32 %v642, %v648
      %v653 = vmul.f32 %v645, %v647
      %v654 = vmul.f32 %v643, %v648
      %v655 = vadd.f32 %v541, %v651
      %v656 = vadd.f32 %v542, %v652
      %v657 = vadd.f32 %v543, %v653
      %v658 = vadd.f32 %v544, %v654
      %659 = vrot.lane.b32.xlu0 %v629, 127
      %v660 = vpop.permute.xlu0 %659
      %661 = vrot.lane.b32.xlu0 %v631, 127
      %v662 = vpop.permute.xlu0 %661
      %663 = vrot.lane.b32.xlu0 %v630, 127
      %v664 = vpop.permute.xlu0 %663
      %665 = vrot.lane.b32.xlu0 %v632, 127
      %v666 = vpop.permute.xlu0 %665
      %vm667 = vcmp.lt.s32.totalorder %v440, 127
      %v668 = vsel %vm667, %v660, %v664
      %v669 = vsel %vm667, %v662, %v666
      %v670 = vsel %vm667, %v664, %v660
      %v671 = vsel %vm667, %v666, %v662
      %v673 = vperm.slane %v430, 0
      %v674 = vperm.slane %v430, 1
      %v677 = vmul.f32 %v668, %v673
      %v678 = vmul.f32 %v670, %v674
      %v679 = vmul.f32 %v669, %v673
      %v680 = vmul.f32 %v671, %v674
      %v681 = vadd.f32 %v655, %v677
      %v682 = vadd.f32 %v656, %v678
      %v683 = vadd.f32 %v657, %v679
      %v684 = vadd.f32 %v658, %v680
      %v685 = vld [vmem:[%s6] sm:$0xf]
      %v686 = vpack.c.bf16 %v685, %v685
      %v687 = vpack.c.bf16 %v683, %v681
      %v688 = vpack.c.bf16 %v684, %v682
      %v689 = vld [vmem:[%s7] sm:$0xf]
      %691 = vset.pattern.permute.xlu0 0
      %692 = vperm.xlu0 %691, %v689
      %v693 = vpop.permute.xlu0 %692
      %vm695 = vcmask 130048
      %v697 = vsel %vm695, %v686, 0
      %699 = vmatpush.bf16.msra.mxu0 0
      %700 = vmatpush.bf16.msra.mxu0 0
      %701 = vmatpush.bf16.msra.mxu0 0
      %702 = vmatpush.bf16.msra.mxu0 0
      %703 = vmatpush.bf16.msra.mxu0 0
      %704 = vmatpush.bf16.msra.mxu0 0
      %705 = vmatpush.bf16.msra.mxu0 0
      %706 = vmatpush.bf16.msra.mxu0 %v687
      %707 = vmatmul.bf16.gmra.mxu0 %v697
      %v708 = vpop.f32.mrf.mxu0
      %v709 = vadd.f32 %v693, %v708
      %v710 = vpop.f32.mrf.mxu0
      %711 = vdwg.mxu0
      %712 = vmatpush.bf16.msra.mxu0 0
      %713 = vmatpush.bf16.msra.mxu0 0
      %714 = vmatpush.bf16.msra.mxu0 0
      %715 = vmatpush.bf16.msra.mxu0 0
      %716 = vmatpush.bf16.msra.mxu0 0
      %717 = vmatpush.bf16.msra.mxu0 0
      %718 = vmatpush.bf16.msra.mxu0 0
      %719 = vmatpush.bf16.msra.mxu0 %v688
      %720 = vmatmul.bf16.gmra.mxu0 %v697
      %v721 = vpop.f32.mrf.mxu0
      %v722 = vadd.f32 %v693, %v721
      %v723 = vpop.f32.mrf.mxu0
      %724 = vdwg.mxu0
      %vm725 = vcmask 1043456
      %v726 = vsel %vm725, %v709, -inf
      %v727 = vrot.slane %v726, 4
      %v728 = vmax.f32 %v726, %v727
      %v729 = vrot.slane %v728, 2
      %v730 = vmax.f32 %v728, %v729
      %v731 = vrot.slane %v730, 1
      %v732 = vmax.f32 %v730, %v731
      %v733 = vsel %vm725, %v722, -inf
      %v734 = vrot.slane %v733, 4
      %v735 = vmax.f32 %v733, %v734
      %v736 = vrot.slane %v735, 2
      %v737 = vmax.f32 %v735, %v736
      %v738 = vrot.slane %v737, 1
      %v739 = vmax.f32 %v737, %v738
      %v740 = vsub.f32 %v709, %v732
      %v741 = vsub.f32 %v722, %v739
      %v742 = vmul.f32 %v740, 1.442695
      %v743 = vpow.pop %v742
      %v744 = vmul.f32 %v741, 1.442695
      %v745 = vpow.pop %v744
      %v746 = vsel %vm725, %v743, 0.0
      %v747 = vrot.slane %v746, 4
      %v748 = vadd.f32 %v746, %v747
      %v749 = vrot.slane %v748, 2
      %v750 = vadd.f32 %v748, %v749
      %v751 = vrot.slane %v750, 1
      %v752 = vadd.f32 %v750, %v751
      %v753 = vsel %vm725, %v745, 0.0
      %v754 = vrot.slane %v753, 4
      %v755 = vadd.f32 %v753, %v754
      %v756 = vrot.slane %v755, 2
      %v757 = vadd.f32 %v755, %v756
      %v758 = vrot.slane %v757, 1
      %v759 = vadd.f32 %v757, %v758
      %v760 = vrcp.pop %v752
      %v761 = vrcp.pop %v759
      %v762 = vmul.f32 %v743, %v760
      %v763 = vmul.f32 %v745, %v761
      %v764 = vld [vmem:[%s8] sm:$0xff]
      %v765 = vld [vmem:[%s8 + $0x8] sm:$0xff]
      %v766 = vpack.c.bf16 %v765, %v764
      %v767 = vpack.c.bf16 %v762, %v762
      %v768 = vpack.c.bf16 %v763, %v763
      %vm769 = vcmask 31744
      %v771 = vsel %vm769, %v766, 0
      %vm773 = vcmask 1041408
      %v775 = vsel %vm773, %v767, 0
      %v778 = vsel %vm773, %v768, 0
      %780 = vmatpush.bf16.msra.mxu0 0
      %781 = vmatpush.bf16.msra.mxu0 0
      %782 = vmatpush.bf16.msra.mxu0 0
      %783 = vmatpush.bf16.msra.mxu0 0
      %784 = vmatpush.bf16.msra.mxu0 0
      %785 = vmatpush.bf16.msra.mxu0 0
      %786 = vmatpush.bf16.msra.mxu0 0
      %787 = vmatpush.bf16.msra.mxu0 %v775
      %788 = vmatmul.bf16.gmra.mxu0 %v771
      %v789 = vpop.f32.mrf.mxu0
      %v790 = vadd.f32 0.0, %v789
      %v791 = vpop.f32.mrf.mxu0
      %v792 = vadd.f32 0.0, %v791
      %793 = vdwg.mxu0
      %794 = vmatpush.bf16.msra.mxu0 0
      %795 = vmatpush.bf16.msra.mxu0 0
      %796 = vmatpush.bf16.msra.mxu0 0
      %797 = vmatpush.bf16.msra.mxu0 0
      %798 = vmatpush.bf16.msra.mxu0 0
      %799 = vmatpush.bf16.msra.mxu0 0
      %800 = vmatpush.bf16.msra.mxu0 0
      %801 = vmatpush.bf16.msra.mxu0 %v778
      %802 = vmatmul.bf16.gmra.mxu0 %v771
      %v803 = vpop.f32.mrf.mxu0
      %v804 = vadd.f32 0.0, %v803
      %v805 = vpop.f32.mrf.mxu0
      %v806 = vadd.f32 0.0, %v805
      %807 = vdwg.mxu0
      %v808 = vld [vmem:[%s9] sm:$0xff]
      %v809 = vld [vmem:[%s9 + $0x8] sm:$0xff]
      %v810 = vmul.f32 %v681, %v790
      %v811 = vmul.f32 %v682, %v804
      %v812 = vmul.f32 %v683, %v792
      %v813 = vmul.f32 %v684, %v806
      %v814 = vpack.c.bf16 %v809, %v808
      %v815 = vpack.c.bf16 %v812, %v810
      %v816 = vpack.c.bf16 %v813, %v811
      %v817 = vld [vmem:[%s10] sm:$0xff]
      %v818 = vld [vmem:[%s10 + $0x8] sm:$0xff]
      %v819 = vpack.c.bf16 %v818, %v817
      %v821 = vsel %vm769, %v819, 0
      %823 = vmatpush.bf16.msra.mxu0 0
      %824 = vmatpush.bf16.msra.mxu0 0
      %825 = vmatpush.bf16.msra.mxu0 0
      %826 = vmatpush.bf16.msra.mxu0 0
      %827 = vmatpush.bf16.msra.mxu0 0
      %828 = vmatpush.bf16.msra.mxu0 0
      %829 = vmatpush.bf16.msra.mxu0 0
      %830 = vmatpush.bf16.msra.mxu0 %v775
      %831 = vmatmul.bf16.gmra.mxu0 %v821
      %v832 = vpop.f32.mrf.mxu0
      %v833 = vadd.f32 0.0, %v832
      %v834 = vpop.f32.mrf.mxu0
      %v835 = vadd.f32 0.0, %v834
      %836 = vdwg.mxu0
      %837 = vmatpush.bf16.msra.mxu0 0
      %838 = vmatpush.bf16.msra.mxu0 0
      %839 = vmatpush.bf16.msra.mxu0 0
      %840 = vmatpush.bf16.msra.mxu0 0
      %841 = vmatpush.bf16.msra.mxu0 0
      %842 = vmatpush.bf16.msra.mxu0 0
      %843 = vmatpush.bf16.msra.mxu0 0
      %844 = vmatpush.bf16.msra.mxu0 %v778
      %845 = vmatmul.bf16.gmra.mxu0 %v821
      %v846 = vpop.f32.mrf.mxu0
      %v847 = vadd.f32 0.0, %v846
      %v848 = vpop.f32.mrf.mxu0
      %v849 = vadd.f32 0.0, %v848
      %850 = vdwg.mxu0
      %v852 = vsel %vm695, %v814, 0
      %854 = vmatpush.bf16.msra.mxu0 0
      %855 = vmatpush.bf16.msra.mxu0 0
      %856 = vmatpush.bf16.msra.mxu0 0
      %857 = vmatpush.bf16.msra.mxu0 0
      %858 = vmatpush.bf16.msra.mxu0 0
      %859 = vmatpush.bf16.msra.mxu0 0
      %860 = vmatpush.bf16.msra.mxu0 0
      %861 = vmatpush.bf16.msra.mxu0 %v815
      %862 = vmatmul.bf16.gmra.mxu0 %v852
      %v863 = vpop.f32.mrf.mxu0
      %v864 = vadd.f32 %v833, %v863
      %v865 = vpop.f32.mrf.mxu0
      %v866 = vadd.f32 %v835, %v865
      %867 = vdwg.mxu0
      %868 = vmatpush.bf16.msra.mxu0 0
      %869 = vmatpush.bf16.msra.mxu0 0
      %870 = vmatpush.bf16.msra.mxu0 0
      %871 = vmatpush.bf16.msra.mxu0 0
      %872 = vmatpush.bf16.msra.mxu0 0
      %873 = vmatpush.bf16.msra.mxu0 0
      %874 = vmatpush.bf16.msra.mxu0 0
      %875 = vmatpush.bf16.msra.mxu0 %v816
      %876 = vmatmul.bf16.gmra.mxu0 %v852
      %v877 = vpop.f32.mrf.mxu0
      %v878 = vadd.f32 %v847, %v877
      %v879 = vpop.f32.mrf.mxu0
      %v880 = vadd.f32 %v849, %v879
      %881 = vdwg.mxu0
      %v882 = vmul.f32 %v864, 0.5
      %v883 = vmul.f32 %v878, 0.5
      %v884 = vmul.f32 %v866, 0.5
      %v885 = vmul.f32 %v880, 0.5
      %v886 = vmul.f32 %v864, 0.044715
      %v887 = vmul.f32 %v878, 0.044715
      %v888 = vmul.f32 %v866, 0.044715
      %v889 = vmul.f32 %v880, 0.044715
      %v890 = vmul.f32 %v886, %v864
      %v891 = vmul.f32 %v887, %v878
      %v892 = vmul.f32 %v888, %v866
      %v893 = vmul.f32 %v889, %v880
      %v894 = vmul.f32 %v890, %v864
      %v895 = vmul.f32 %v891, %v878
      %v896 = vmul.f32 %v892, %v866
      %v897 = vmul.f32 %v893, %v880
      %v898 = vadd.f32 %v864, %v894
      %v899 = vadd.f32 %v878, %v895
      %v900 = vadd.f32 %v866, %v896
      %v901 = vadd.f32 %v880, %v897
      %v902 = vmul.f32 %v898, 0.7978846
      %v903 = vmul.f32 %v899, 0.7978846
      %v904 = vmul.f32 %v900, 0.7978846
      %v905 = vmul.f32 %v901, 0.7978846
      %v906 = vtanh.pop %v902
      %v907 = vtanh.pop %v903
      %v908 = vtanh.pop %v904
      %v909 = vtanh.pop %v905
      %v910 = vadd.f32 %v906, 1.0
      %v911 = vadd.f32 %v907, 1.0
      %v912 = vadd.f32 %v908, 1.0
      %v913 = vadd.f32 %v909, 1.0
      %v914 = vmul.f32 %v882, %v910
      %v915 = vmul.f32 %v883, %v911
      %v916 = vmul.f32 %v884, %v912
      %v917 = vmul.f32 %v885, %v913
      %918 = vst [vmem:[%s386] sm:$0xff] %v914
      %919 = vst [vmem:[%s386 + $0x8] sm:$0xff] %v915
      %920 = vst [vmem:[%s386 + $0x10] sm:$0xff] %v916
      %921 = vst [vmem:[%s386 + $0x18] sm:$0xff] %v917
      %p922 = scmp.lt.s32.totalorder %s22, 1
      %s923 = scalar_select %p922, %s22, 1
      %s924 = smul.addr %s923, 4
      %s925 = smul.addr %s924, 8
      %s926 = scalar_lea.vmem %s11, %s925
      // Predicated region
      $region65: #{token_mixer_forward.4} parent=63 // pred_check
        %p927 = pneg %p276
      $region66: #{token_mixer_forward.4} parent=63 // pred_check_branch
        %929 = sbr.rel (%p927) target = $region68
      $region67: #{token_mixer_forward.4} parent=63 // pred_region
        _
      $region68: #{token_mixer_forward.4} parent=63 // pred_fallthru
        _
    $region64: #{token_mixer_forward.4} parent=5 // pred_fallthru
      _
    %p930 = scmp.le.s32.totalorder 2, %s17
    // Predicated region
    $region69: #{token_mixer_forward.4} parent=5 // pred_check
      %p931 = pneg %p930
    $region70: #{token_mixer_forward.4} parent=5 // pred_check_branch
      %933 = sbr.rel (%p931) target = $region72
    $region71: #{token_mixer_forward.4} parent=5 // pred_region
      %s934 = ssub.s32 %s17, 2
      // Predicated region
      $region73: #{token_mixer_forward.4} parent=71 // pred_check
        %p935 = pneg %p282
      $region74: #{token_mixer_forward.4} parent=71 // pred_check_branch
        %937 = sbr.rel (%p935) target = $region76
      $region75: #{token_mixer_forward.4} parent=71 // pred_region
        %p938 = scmp.lt.s32.totalorder %s23, 1
        %s939 = scalar_select %p938, %s23, 1
        %s940 = smul.addr %s939, 4
        %s941 = smul.addr %s940, 8
        %s942 = scalar_lea.vmem %s11, %s941
      $region76: #{token_mixer_forward.4} parent=71 // pred_fallthru
        _
    $region72: #{token_mixer_forward.4} parent=5 // pred_fallthru
      _
  $region6: #{token_mixer_forward.4} parent=0 // loop_footer
    %s21 = sadd.s32 1, %s17
  $region7: #{token_mixer_forward.4} parent=0 // loop_footer_branch
    %16 = sbr.rel target = $region3
  $region8: #{token_mixer_forward.4} parent=0 // loop_exit
    _

// kernel: token_mixer_forward.5
$region0: #{token_mixer_forward.5}
  #allocation0 [shape = 'u32[]', space=smem, size = 0x4, offset = 0x4, fixed_abs, tag = 'smem constant byte address 0x4 - core index']
  #allocation1 [shape = 'u32[72,128]{1,0:T(1,128)}', space=vmem, size = 0x9000, scoped, tag = 'internal scratch']
  %s0 = inlined_call_operand.vmem [shape: f32[2,8,256], index: 0, kind: input, shape index: {}]
  %s1 = inlined_call_operand.vmem [shape: f32[2,8,256], index: 1, kind: input, shape index: {}]
  %s2 = inlined_call_operand.vmem [shape: f32[4,8], index: 2, kind: input, shape index: {}]
  %s3 = inlined_call_operand.vmem [shape: f32[4,1], index: 3, kind: input, shape index: {}]
  %s4 = inlined_call_operand.vmem [shape: f32[2,4,256], index: 4, kind: output, shape index: {}]
  %s5 = sld [smem:[#allocation0]]
  $region49: #{token_mixer_forward.5} parent=0
    _
  %s7 = ssub.s32 1, %s5
  %s8 = scalar_select 0, %s7, %s5
  loop: start=0, step=1, limit=4
  $region2: #{token_mixer_forward.5} parent=0 // loop_pre_header
    _
  $region3: #{token_mixer_forward.5} parent=0 // loop_header
    %s10 = sphi 0, %s14
    %p11 = scmp.ge.s32.totalorder %s10, 4
    %s17 = sphi 0, %s29
    %s18 = sphi 0, %s25
    %s19 = sphi 0, %s17
    %s20 = sphi 0, %s18
    %s21 = sphi 0, %s19
    %s22 = sphi 0, %s20
    %s34 = sphi 0, %s36
    %s37 = sphi 0, %s34
    %s38 = sphi 0, %s37
    %s54 = sphi 0, %s38
    %s62 = sphi 0, %s64
    %s65 = sphi 0, %s62
    %s66 = sphi 0, %s65
    %s82 = sphi 0, %s66
    %s86 = sphi 0, %s86
    %s88 = sphi 0, %s86
    %s89 = sphi 0, %s88
    %s103 = sphi 0, %s89
    %s107 = sphi 0, %s107
    %s109 = sphi 0, %s107
    %s110 = sphi 0, %s109
    %s124 = sphi 0, %s110
    %s132 = sphi 0, %s134
    %s135 = sphi 0, %s132
    %s136 = sphi 0, %s135
    %s152 = sphi 0, %s136
  $region4: #{token_mixer_forward.5} parent=0 // loop_header_branch
    %13 = sbr.rel (%p11) target = $region8
  $region5: #{token_mixer_forward.5} parent=0 // loop_body
    %s15 = ssub.s32 %s10, 1
    %s16 = ssub.s32 %s10, 2
    %s23 = sadd.s32 1, %s18
    %p24 = scmp.ge.s32.totalorder %s23, 1
    %s25 = scalar_select %p24, 0, %s23
    %s26 = sadd.s32 1, %s17
    %s27 = scalar_select %p24, %s26, %s17
    %p28 = scmp.ge.s32.totalorder %s27, 2
    %s29 = scalar_select %p28, 0, %s27
    %s30 = ssub.s32 %s17, %s29
    %s31 = ssub.s32 %s18, %s25
    %s32 = sor.u32 %s30, %s31
    %p33 = scmp.eq.s32.totalorder %s32, 0
    %s35 = sadd.s32 %s34, 1
    %s36 = scalar_select %p33, %s34, %s35
    %p39 = pneg %p33
    %p40 = scmp.eq.s32.totalorder %s10, 1
    %p41 = por %p39, %p40
    %p42 = scmp.ne.s32.totalorder %s34, %s37
    %p43 = scmp.eq.s32.totalorder %s10, 0
    %p44 = por %p42, %p43
    %p45 = scmp.ne.s32.totalorder %s34, %s37
    %p46 = scmp.eq.s32.totalorder %s15, 1
    %p47 = por %p45, %p46
    %p48 = scmp.ne.s32.totalorder %s37, %s38
    %p49 = scmp.eq.s32.totalorder %s15, 0
    %p50 = por %p48, %p49
    %p51 = scmp.ne.s32.totalorder %s37, %s38
    %p52 = scmp.eq.s32.totalorder %s16, 1
    %p53 = por %p51, %p52
    %p55 = scmp.ne.s32.totalorder %s38, %s54
    %p56 = scmp.eq.s32.totalorder %s16, 0
    %p57 = por %p55, %p56
    %s58 = ssub.s32 %s17, %s29
    %s59 = ssub.s32 %s18, %s25
    %s60 = sor.u32 %s58, %s59
    %p61 = scmp.eq.s32.totalorder %s60, 0
    %s63 = sadd.s32 %s62, 1
    %s64 = scalar_select %p61, %s62, %s63
    %p67 = pneg %p61
    %p68 = scmp.eq.s32.totalorder %s10, 1
    %p69 = por %p67, %p68
    %p70 = scmp.ne.s32.totalorder %s62, %s65
    %p71 = scmp.eq.s32.totalorder %s10, 0
    %p72 = por %p70, %p71
    %p73 = scmp.ne.s32.totalorder %s62, %s65
    %p74 = scmp.eq.s32.totalorder %s15, 1
    %p75 = por %p73, %p74
    %p76 = scmp.ne.s32.totalorder %s65, %s66
    %p77 = scmp.eq.s32.totalorder %s15, 0
    %p78 = por %p76, %p77
    %p79 = scmp.ne.s32.totalorder %s65, %s66
    %p80 = scmp.eq.s32.totalorder %s16, 1
    %p81 = por %p79, %p80
    %p83 = scmp.ne.s32.totalorder %s66, %s82
    %p84 = scmp.eq.s32.totalorder %s16, 0
    %p85 = por %p83, %p84
    %s87 = sadd.s32 %s86, 1
    %p90 = scmp.eq.s32.totalorder %s10, 1
    %p91 = scmp.ne.s32.totalorder %s86, %s88
    %p92 = scmp.eq.s32.totalorder %s10, 0
    %p93 = por %p91, %p92
    %p94 = scmp.ne.s32.totalorder %s86, %s88
    %p95 = scmp.eq.s32.totalorder %s15, 1
    %p96 = por %p94, %p95
    %p97 = scmp.ne.s32.totalorder %s88, %s89
    %p98 = scmp.eq.s32.totalorder %s15, 0
    %p99 = por %p97, %p98
    %p100 = scmp.ne.s32.totalorder %s88, %s89
    %p101 = scmp.eq.s32.totalorder %s16, 1
    %p102 = por %p100, %p101
    %p104 = scmp.ne.s32.totalorder %s89, %s103
    %p105 = scmp.eq.s32.totalorder %s16, 0
    %p106 = por %p104, %p105
    %s108 = sadd.s32 %s107, 1
    %p111 = scmp.eq.s32.totalorder %s10, 1
    %p112 = scmp.ne.s32.totalorder %s107, %s109
    %p113 = scmp.eq.s32.totalorder %s10, 0
    %p114 = por %p112, %p113
    %p115 = scmp.ne.s32.totalorder %s107, %s109
    %p116 = scmp.eq.s32.totalorder %s15, 1
    %p117 = por %p115, %p116
    %p118 = scmp.ne.s32.totalorder %s109, %s110
    %p119 = scmp.eq.s32.totalorder %s15, 0
    %p120 = por %p118, %p119
    %p121 = scmp.ne.s32.totalorder %s109, %s110
    %p122 = scmp.eq.s32.totalorder %s16, 1
    %p123 = por %p121, %p122
    %p125 = scmp.ne.s32.totalorder %s110, %s124
    %p126 = scmp.eq.s32.totalorder %s16, 0
    %p127 = por %p125, %p126
    %s128 = ssub.s32 %s17, %s29
    %s129 = ssub.s32 %s18, %s25
    %s130 = sor.u32 %s128, %s129
    %p131 = scmp.eq.s32.totalorder %s130, 0
    %s133 = sadd.s32 %s132, 1
    %s134 = scalar_select %p131, %s132, %s133
    %p137 = pneg %p131
    %p138 = scmp.eq.s32.totalorder %s10, 1
    %p139 = por %p137, %p138
    %p140 = scmp.ne.s32.totalorder %s132, %s135
    %p141 = scmp.eq.s32.totalorder %s10, 0
    %p142 = por %p140, %p141
    %p143 = scmp.ne.s32.totalorder %s132, %s135
    %p144 = scmp.eq.s32.totalorder %s15, 1
    %p145 = por %p143, %p144
    %p146 = scmp.ne.s32.totalorder %s135, %s136
    %p147 = scmp.eq.s32.totalorder %s15, 0
    %p148 = por %p146, %p147
    %p149 = scmp.ne.s32.totalorder %s135, %s136
    %p150 = scmp.eq.s32.totalorder %s16, 1
    %p151 = por %p149, %p150
    %p153 = scmp.ne.s32.totalorder %s136, %s152
    %p154 = scmp.eq.s32.totalorder %s16, 0
    %p155 = por %p153, %p154
    %p156 = scmp.le.s32.totalorder 1, %s10
    %p157 = scmp.lt.s32.totalorder %s10, 3
    %p158 = pnand %p156, %p157
    %p159 = pneg %p158
    // Predicated region
    $region9: #{token_mixer_forward.5} parent=5 // pred_check
      _
    $region10: #{token_mixer_forward.5} parent=5 // pred_check_branch
      %161 = sbr.rel (%p158) target = $region12
    $region11: #{token_mixer_forward.5} parent=5 // pred_region
      %s162 = ssub.s32 %s10, 1
      // Predicated region
      $region13: #{token_mixer_forward.5} parent=11 // pred_check
        %p163 = pneg %p99
      $region14: #{token_mixer_forward.5} parent=11 // pred_check_branch
        %165 = sbr.rel (%p163) target = $region16
      $region15: #{token_mixer_forward.5} parent=11 // pred_region
        _
      $region16: #{token_mixer_forward.5} parent=11 // pred_fallthru
        _
      // Predicated region
      $region17: #{token_mixer_forward.5} parent=11 // pred_check
        %p166 = pneg %p120
      $region18: #{token_mixer_forward.5} parent=11 // pred_check_branch
        %168 = sbr.rel (%p166) target = $region20
      $region19: #{token_mixer_forward.5} parent=11 // pred_region
        _
      $region20: #{token_mixer_forward.5} parent=11 // pred_fallthru
        _
    $region12: #{token_mixer_forward.5} parent=5 // pred_fallthru
      _
    %p169 = scmp.lt.s32.totalorder %s10, 2
    // Predicated region
    $region21: #{token_mixer_forward.5} parent=5 // pred_check
      %p170 = pneg %p169
    $region22: #{token_mixer_forward.5} parent=5 // pred_check_branch
      %172 = sbr.rel (%p170) target = $region24
    $region23: #{token_mixer_forward.5} parent=5 // pred_region
      // Predicated region
      $region25: #{token_mixer_forward.5} parent=23 // pred_check
        %p173 = pneg %p44
      $region26: #{token_mixer_forward.5} parent=23 // pred_check_branch
        %175 = sbr.rel (%p173) target = $region28
      $region27: #{token_mixer_forward.5} parent=23 // pred_region
        %s176 = smul.u32 2, %s18
        %p177 = scmp.lt.s32.totalorder %s17, 1
        %s178 = scalar_select %p177, %s17, 1
        %p179 = scmp.lt.s32.totalorder %s176, 1
        %s180 = scalar_select %p179, %s176, 1
        %s181 = smul.addr %s178, 2
        %s182 = sadd.s32 %s180, %s181
        %s183 = smul.addr %s182, 8
        %s184 = scalar_lea.vmem %s0, %s183
        %s185 = smul.u32 2, %s18
      $region28: #{token_mixer_forward.5} parent=23 // pred_fallthru
        _
      // Predicated region
      $region29: #{token_mixer_forward.5} parent=23 // pred_check
        %p186 = pneg %p72
      $region30: #{token_mixer_forward.5} parent=23 // pred_check_branch
        %188 = sbr.rel (%p186) target = $region32
      $region31: #{token_mixer_forward.5} parent=23 // pred_region
        %s189 = smul.u32 2, %s18
        %p190 = scmp.lt.s32.totalorder %s17, 1
        %s191 = scalar_select %p190, %s17, 1
        %p192 = scmp.lt.s32.totalorder %s189, 1
        %s193 = scalar_select %p192, %s189, 1
        %s194 = smul.addr %s191, 2
        %s195 = sadd.s32 %s193, %s194
        %s196 = smul.addr %s195, 8
        %s197 = scalar_lea.vmem %s1, %s196
        %s198 = smul.u32 2, %s18
      $region32: #{token_mixer_forward.5} parent=23 // pred_fallthru
        _
    $region24: #{token_mixer_forward.5} parent=5 // pred_fallthru
      _
    %p199 = scmp.le.s32.totalorder 1, %s10
    %p200 = scmp.lt.s32.totalorder %s10, 3
    %p201 = pnand %p199, %p200
    %p202 = pneg %p201
    // Predicated region
    $region33: #{token_mixer_forward.5} parent=5 // pred_check
      _
    $region34: #{token_mixer_forward.5} parent=5 // pred_check_branch
      %204 = sbr.rel (%p201) target = $region36
    $region35: #{token_mixer_forward.5} parent=5 // pred_region
      %s205 = ssub.s32 %s10, 1
      %s206 = smul.u32 2, %s20
      %p207 = scmp.lt.s32.totalorder %s19, 1
      %s208 = scalar_select %p207, %s19, 1
      %p209 = scmp.lt.s32.totalorder %s206, 1
      %s210 = scalar_select %p209, %s206, 1
      %s211 = smul.addr %s208, 2
      %s212 = sadd.s32 %s210, %s211
      %s213 = smul.addr %s212, 8
      %s214 = scalar_lea.vmem %s0, %s213
      %p215 = pneg %p50
      %p216 = pneg %p47
      %s217 = smul.u32 2, %s20
      %p218 = scmp.lt.s32.totalorder %s19, 1
      %s219 = scalar_select %p218, %s19, 1
      %p220 = scmp.lt.s32.totalorder %s217, 1
      %s221 = scalar_select %p220, %s217, 1
      %s222 = smul.addr %s219, 2
      %s223 = sadd.s32 %s221, %s222
      %s224 = smul.addr %s223, 8
      %s225 = scalar_lea.vmem %s1, %s224
      %p226 = pneg %p78
      %p227 = pneg %p75
      %p228 = pneg %p99
      %p229 = pneg %p96
      %p230 = pneg %p120
      %p231 = pneg %p117
      %p232 = pneg %p148
      %p233 = pneg %p145
      %s234 = smul.u32 2, %s20
      %p235 = scmp.lt.s32.totalorder %s19, 1
      %s236 = scalar_select %p235, %s19, 1
      %p237 = scmp.lt.s32.totalorder %s234, 1
      %s238 = scalar_select %p237, %s234, 1
      %s239 = smul.addr %s236, 2
      %s240 = sadd.s32 %s238, %s239
      %s241 = smul.addr %s240, 4
      %s242 = scalar_lea.vmem %s4, %s241
      %s243 = smul.u32 2, %s20
      %p244 = scmp.lt.s32.totalorder %s19, 1
      %s245 = scalar_select %p244, %s19, 1
      %p246 = scmp.lt.s32.totalorder %s243, 1
      %s247 = scalar_select %p246, %s243, 1
      %s248 = smul.addr %s245, 2
      %s249 = sadd.s32 %s247, %s248
      %s250 = smul.addr %s249, 8
      %s251 = scalar_lea.vmem %s0, %s250
      %s252 = smul.u32 2, %s20
      %s253 = smul.u32 2, %s20
      %p254 = scmp.lt.s32.totalorder %s19, 1
      %s255 = scalar_select %p254, %s19, 1
      %p256 = scmp.lt.s32.totalorder %s253, 1
      %s257 = scalar_select %p256, %s253, 1
      %s258 = smul.addr %s255, 2
      %s259 = sadd.s32 %s257, %s258
      %s260 = smul.addr %s259, 8
      %s261 = scalar_lea.vmem %s1, %s260
      %s262 = smul.u32 2, %s20
      %s263 = smul.u32 2, %s20
      %p264 = scmp.lt.s32.totalorder %s19, 1
      %s265 = scalar_select %p264, %s19, 1
      %p266 = scmp.lt.s32.totalorder %s263, 1
      %s267 = scalar_select %p266, %s263, 1
      %s268 = smul.addr %s265, 2
      %s269 = sadd.s32 %s267, %s268
      %s270 = smul.addr %s269, 4
      %s271 = scalar_lea.vmem %s4, %s270
      %s272 = smul.u32 2, %s20
      %v274 = vld [vmem:[%s251] sm:$0xff]
      %v275 = vld [vmem:[%s251 + $0x8] sm:$0xff]
      %v276 = vld [vmem:[%s261] sm:$0xff]
      %v277 = vld [vmem:[%s261 + $0x8] sm:$0xff]
      %v278 = vadd.f32 %v274, %v276
      %v279 = vadd.f32 %v275, %v277
      %v280 = vld [vmem:[%s2] sm:$0xf]
      %v281 = vpack.c.bf16 %v280, %v280
      %v282 = vpack.c.bf16 %v278, %v278
      %v283 = vpack.c.bf16 %v279, %v279
      %v284 = vld [vmem:[%s3] sm:$0xf]
      %286 = vset.pattern.permute.xlu0 0
      %287 = vperm.xlu0 %286, %v284
      %v288 = vpop.permute.xlu0 %287
      %vm290 = vcmask 64512
      %v292 = vsel %vm290, %v281, 0
      %vm294 = vcmask 1043456
      %v296 = vsel %vm294, %v282, 0
      %v299 = vsel %vm294, %v283, 0
      %301 = vmatpush.bf16.msra.mxu0 0
      %302 = vmatpush.bf16.msra.mxu0 0
      %303 = vmatpush.bf16.msra.mxu0 0
      %304 = vmatpush.bf16.msra.mxu0 0
      %305 = vmatpush.bf16.msra.mxu0 0
      %306 = vmatpush.bf16.msra.mxu0 0
      %307 = vmatpush.bf16.msra.mxu0 0
      %308 = vmatpush.bf16.msra.mxu0 %v296
      %309 = vmatmul.bf16.gmra.mxu0 %v292
      %v310 = vpop.f32.mrf.mxu0
      %v311 = vadd.f32 %v288, %v310
      %v312 = vpop.f32.mrf.mxu0
      %313 = vdwg.mxu0
      %314 = vmatpush.bf16.msra.mxu0 0
      %315 = vmatpush.bf16.msra.mxu0 0
      %316 = vmatpush.bf16.msra.mxu0 0
      %317 = vmatpush.bf16.msra.mxu0 0
      %318 = vmatpush.bf16.msra.mxu0 0
      %319 = vmatpush.bf16.msra.mxu0 0
      %320 = vmatpush.bf16.msra.mxu0 0
      %321 = vmatpush.bf16.msra.mxu0 %v299
      %322 = vmatmul.bf16.gmra.mxu0 %v292
      %v323 = vpop.f32.mrf.mxu0
      %v324 = vadd.f32 %v288, %v323
      %v325 = vpop.f32.mrf.mxu0
      %326 = vdwg.mxu0
      %v327 = vmul.f32 %v311, 0.5
      %v328 = vmul.f32 %v324, 0.5
      %v329 = vmul.f32 %v311, 0.044715
      %v330 = vmul.f32 %v324, 0.044715
      %v331 = vmul.f32 %v329, %v311
      %v332 = vmul.f32 %v330, %v324
      %v333 = vmul.f32 %v331, %v311
      %v334 = vmul.f32 %v332, %v324
      %v335 = vadd.f32 %v311, %v333
      %v336 = vadd.f32 %v324, %v334
      %v337 = vmul.f32 %v335, 0.7978846
      %v338 = vmul.f32 %v336, 0.7978846
      %v339 = vtanh.pop %v337
      %v340 = vtanh.pop %v338
      %v341 = vadd.f32 %v339, 1.0
      %v342 = vadd.f32 %v340, 1.0
      %v343 = vmul.f32 %v327, %v341
      %v344 = vmul.f32 %v328, %v342
      %v347 = vrot.slane %v344, 4
      %v348 = vsel %vm294, %v343, %v347
      %350 = vst [vmem:[%s271] sm:$0xff] %v348
      %s351 = smul.u32 2, %s20
      %p352 = scmp.lt.s32.totalorder %s19, 1
      %s353 = scalar_select %p352, %s19, 1
      %p354 = scmp.lt.s32.totalorder %s351, 1
      %s355 = scalar_select %p354, %s351, 1
      %s356 = smul.addr %s353, 2
      %s357 = sadd.s32 %s355, %s356
      %s358 = smul.addr %s357, 4
      %s359 = scalar_lea.vmem %s4, %s358
      // Predicated region
      $region37: #{token_mixer_forward.5} parent=35 // pred_check
        %p360 = pneg %p145
      $region38: #{token_mixer_forward.5} parent=35 // pred_check_branch
        %362 = sbr.rel (%p360) target = $region40
      $region39: #{token_mixer_forward.5} parent=35 // pred_region
        %s363 = smul.u32 2, %s20
      $region40: #{token_mixer_forward.5} parent=35 // pred_fallthru
        _
    $region36: #{token_mixer_forward.5} parent=5 // pred_fallthru
      _
    %p364 = scmp.le.s32.totalorder 2, %s10
    // Predicated region
    $region41: #{token_mixer_forward.5} parent=5 // pred_check
      %p365 = pneg %p364
    $region42: #{token_mixer_forward.5} parent=5 // pred_check_branch
      %367 = sbr.rel (%p365) target = $region44
    $region43: #{token_mixer_forward.5} parent=5 // pred_region
      %s368 = ssub.s32 %s10, 2
      // Predicated region
      $region45: #{token_mixer_forward.5} parent=43 // pred_check
        %p369 = pneg %p151
      $region46: #{token_mixer_forward.5} parent=43 // pred_check_branch
        %371 = sbr.rel (%p369) target = $region48
      $region47: #{token_mixer_forward.5} parent=43 // pred_region
        %s372 = smul.u32 2, %s22
        %p373 = scmp.lt.s32.totalorder %s21, 1
        %s374 = scalar_select %p373, %s21, 1
        %p375 = scmp.lt.s32.totalorder %s372, 1
        %s376 = scalar_select %p375, %s372, 1
        %s377 = smul.addr %s374, 2
        %s378 = sadd.s32 %s376, %s377
        %s379 = smul.addr %s378, 4
        %s380 = scalar_lea.vmem %s4, %s379
      $region48: #{token_mixer_forward.5} parent=43 // pred_fallthru
        _
    $region44: #{token_mixer_forward.5} parent=5 // pred_fallthru
      _
  $region6: #{token_mixer_forward.5} parent=0 // loop_footer
    %s14 = sadd.s32 1, %s10
  $region7: #{token_mixer_forward.5} parent=0 // loop_footer_branch
    %9 = sbr.rel target = $region3
  $region8: #{token_mixer_forward.5} parent=0 // loop_exit
    _

</llo_original>
